<compile_context>
chip_gen: v7x
topology: tpu7x:2x2x1
jax: 0.10.0
libtpu: 0.0.40
codegen_flags: <defaults>
</compile_context>

<pallas_src>
import functools

import jax
import jax.numpy as jnp
import numpy as np
from jax.experimental import pallas as pl
from jax.experimental.pallas import tpu as pltpu

LN_EPS = 1e-5  # torch.nn.LayerNorm default eps
HIGHEST = jax.lax.Precision.HIGHEST

# Row indices inside the packed per-layer (NV, Dmax) vector block.
_BATT, _BF1, _BF2, _G1, _BE1, _G2, _BE2 = range(7)
NV = 7


# ----------------------------- kernel helpers --------------------------------
def _dot(a, w):
    # Mixed-precision MXU dot: bf16 inputs, f32 accumulation.
    return jnp.dot(a.astype(jnp.bfloat16), w, preferred_element_type=jnp.float32)


def _layernorm(x, gamma, beta):
    # Two-pass form (matches nn.LayerNorm; avoids E[x^2]-mu^2 cancellation).
    mu = jnp.mean(x, axis=-1, keepdims=True)
    xc = x - mu
    var = jnp.mean(xc * xc, axis=-1, keepdims=True)
    return xc * jax.lax.rsqrt(var + LN_EPS) * gamma + beta


# ----------------------------- kernels ----------------------------------------
def _encoder_kernel(feats_ref, pw_ref, pb_ref,
                    watt_ref, wf1_ref, wf2_ref, vec_ref,
                    out_ref, *, hid, pf):
    l = pl.program_id(1)

    # Layer 0 also performs the 512 -> H projection (self.l1) into the resident
    # activation block.
    @pl.when(l == 0)
    def _():
        out_ref[...] = _dot(feats_ref[...], pw_ref[...]) + pb_ref[...]

    src = out_ref[...]          # (TB, H) activation, resident across the layer axis
    vec = vec_ref[...]          # (NV, Dmax) packed f32 biases / LayerNorm params

    b_att = vec[_BATT:_BATT + 1, :2 * hid]
    bf1 = vec[_BF1:_BF1 + 1, :pf]
    bf2 = vec[_BF2:_BF2 + 1, :hid]
    g1 = vec[_G1:_G1 + 1, :hid]
    be1 = vec[_BE1:_BE1 + 1, :hid]
    g2 = vec[_G2:_G2 + 1, :hid]
    be2 = vec[_BE2:_BE2 + 1, :hid]

    # --- attention (seq==1: attn@V == V) + AoA gate, fully folded at pack time ---
    g = _dot(src, watt_ref[...]) + b_att
    attn = jax.nn.sigmoid(g[:, :hid]) * g[:, hid:]

    # --- residual + self_attn_layer_norm (dropout = identity in eval) ---
    h = _layernorm(src + attn, g1, be1)

    # --- PositionwiseFeedforwardLayer (ReLU after BOTH fc_1 and fc_2, as in the module) ---
    f = jnp.maximum(_dot(h, wf1_ref[...]) + bf1, 0.0)
    f = jnp.maximum(_dot(f, wf2_ref[...]) + bf2, 0.0)

    # --- residual + ff_layer_norm1 ---
    out_ref[...] = _layernorm(h + f, g2, be2)


def _proj_kernel(x_ref, w_ref, b_ref, o_ref):
    o_ref[...] = _dot(x_ref[...], w_ref[...]) + b_ref[...]


# ----------------------------- wrappers ---------------------------------------
def _batch_tiling(b):
    """Sublane-dense batch tile: multiple of 8, capped at 256 rows."""
    b8 = max(8, ((b + 7) // 8) * 8)
    tb = min(256, b8)
    b_pad = ((b8 + tb - 1) // tb) * tb
    return tb, b_pad


def _vmem_limit_bytes():
    """Raise the scoped VMEM limit, never past the chip's physical capacity."""
    try:
        cap = int(pltpu.get_tpu_info().vmem_capacity_bytes)
    except Exception:
        cap = 64 << 20          # conservative: v7x physical per-TC VMEM
    return int(min(max(cap - (8 << 20), 32 << 20), 100 << 20))


def _clip_proj(feats_p, w, b_vec, tb):
    b_pad, in_dim = feats_p.shape
    hid = w.shape[1]
    return pl.pallas_call(
        _proj_kernel,
        out_shape=jax.ShapeDtypeStruct((b_pad, hid), jnp.float32),
        grid=(b_pad // tb,),
        in_specs=[
            pl.BlockSpec((tb, in_dim), lambda i: (i, 0)),
            pl.BlockSpec((in_dim, hid), lambda i: (0, 0)),
            pl.BlockSpec((1, hid), lambda i: (0, 0)),
        ],
        out_specs=pl.BlockSpec((tb, hid), lambda i: (i, 0)),
        compiler_params=pltpu.CompilerParams(dimension_semantics=("parallel",)),
    )(feats_p, w, b_vec)


def clip_encoder_forward(feats, packed, *, hid, pf, is_attention=True):
    """feats: (B, 512) float32 output of clip_model.encode_image (external)."""
    b, in_dim = feats.shape
    tb, b_pad = _batch_tiling(b)
    feats_p = jnp.zeros((b_pad, in_dim), jnp.float32).at[:b].set(feats)

    if not is_attention:
        return _clip_proj(feats_p, packed["proj_w"], packed["proj_b"], tb)[:b]

    n_layers = packed["W_att"].shape[0]
    dmax = packed["Vec"].shape[-1]

    const = lambda bi, li: (0, 0)
    per_layer = lambda shape: pl.BlockSpec((None,) + shape, lambda bi, li: (li, 0, 0))

    out = pl.pallas_call(
        functools.partial(_encoder_kernel, hid=hid, pf=pf),
        out_shape=jax.ShapeDtypeStruct((b_pad, hid), jnp.float32),
        grid=(b_pad // tb, n_layers),
        in_specs=[
            pl.BlockSpec((tb, in_dim), lambda bi, li: (bi, 0)),   # clip features (f32)
            pl.BlockSpec((in_dim, hid), const),                   # proj weight (bf16)
            pl.BlockSpec((1, hid), const),                        # proj bias   (f32)
            per_layer((hid, 2 * hid)),                            # W_att (folded attn+AoA, bf16)
            per_layer((hid, pf)),                                 # Wf1 (bf16)
            per_layer((pf, hid)),                                 # Wf2 (bf16)
            per_layer((NV, dmax)),                                # packed biases / LN params (f32)
        ],
        out_specs=pl.BlockSpec((tb, hid), lambda bi, li: (bi, 0)),
        compiler_params=pltpu.CompilerParams(
            dimension_semantics=("parallel", "arbitrary"),
            vmem_limit_bytes=_vmem_limit_bytes()),
    )(feats_p, packed["proj_w"], packed["proj_b"],
      packed["W_att"], packed["Wf1"], packed["Wf2"], packed["Vec"])

    # Drop batch padding, restore the unsqueeze(1) seq axis: (B, 1, H).
    return out[:b, None, :]


# ----------------------------- parameters -------------------------------------
def _linear_params(key, fan_in, fan_out):
    # PyTorch nn.Linear default init: U(-1/sqrt(fan_in), 1/sqrt(fan_in)).
    kw, kb = jax.random.split(key)
    bound = 1.0 / np.sqrt(fan_in)
    w_t = jax.random.uniform(kw, (fan_in, fan_out), jnp.float32, -bound, bound)
    b = jax.random.uniform(kb, (1, fan_out), jnp.float32, -bound, bound)
    return w_t, b  # weight stored pre-transposed: (in, out)


def init_params(key, hid, pf, n_layers):
    keys = jax.random.split(key, 1 + n_layers)
    proj_w, proj_b = _linear_params(keys[0], 512, hid)
    layers = []
    for li in range(n_layers):
        lk = jax.random.split(keys[1 + li], 6)
        wv, bv = _linear_params(lk[0], hid, hid)
        wo, bo = _linear_params(lk[1], hid, hid)
        wl1, bl1 = _linear_params(lk[2], 2 * hid, hid)
        wl2, bl2 = _linear_params(lk[3], 2 * hid, hid)
        wf1, bf1 = _linear_params(lk[4], hid, pf)
        wf2, bf2 = _linear_params(lk[5], pf, hid)
        layers.append(dict(
            wv=wv, bv=bv, wo=wo, bo=bo,
            wl1=wl1, bl1=bl1, wl2=wl2, bl2=bl2,
            g1=jnp.ones((1, hid), jnp.float32), be1=jnp.zeros((1, hid), jnp.float32),
            wf1=wf1, bf1=bf1, wf2=wf2, bf2=bf2,
            g2=jnp.ones((1, hid), jnp.float32), be2=jnp.zeros((1, hid), jnp.float32),
        ))
    return dict(proj_w=proj_w, proj_b=proj_b, layers=layers)


def pack_params(params, hid, pf):
    """Fold the degenerate seq==1 attention path, stack layer weights (L, in, out) in
    bf16, and pack all per-layer vectors into one f32 (L, NV, Dmax) block."""
    layers = params["layers"]
    dmax = max(2 * hid, pf)
    dotH = lambda a, b: jnp.dot(a, b, precision=HIGHEST)

    def row(v, width):
        return jnp.pad(jnp.reshape(v, (-1,)).astype(jnp.float32), (0, dmax - width))

    W_att, Wf1, Wf2, Vec = [], [], [], []
    for lp in layers:
        # attn@V == V  =>  fc_o(fc_v(src)) = src @ Wvo + bvo
        wvo = dotH(lp["wv"], lp["wo"])                               # (H, H)
        bvo = dotH(lp["bv"], lp["wo"]) + lp["bo"]                    # (1, H)
        # cat([x, src]) @ l.W  =  src @ (Wvo @ W_top + W_bot) + bvo @ W_top
        w1 = dotH(wvo, lp["wl1"][:hid]) + lp["wl1"][hid:]
        b1 = lp["bl1"] + dotH(bvo, lp["wl1"][:hid])
        w2 = dotH(wvo, lp["wl2"][:hid]) + lp["wl2"][hid:]
        b2 = lp["bl2"] + dotH(bvo, lp["wl2"][:hid])
        W_att.append(jnp.concatenate([w1, w2], axis=1))              # (H, 2H)
        b_att = jnp.concatenate([b1, b2], axis=1)                    # (1, 2H)

        Wf1.append(lp["wf1"])
        Wf2.append(lp["wf2"])
        Vec.append(jnp.stack([
            row(b_att, 2 * hid),
            row(lp["bf1"], pf),
            row(lp["bf2"], hid),
            row(lp["g1"], hid),
            row(lp["be1"], hid),
            row(lp["g2"], hid),
            row(lp["be2"], hid),
        ]))

    return dict(
        proj_w=params["proj_w"].astype(jnp.bfloat16),
        proj_b=params["proj_b"],                       # f32
        W_att=jnp.stack(W_att).astype(jnp.bfloat16),
        Wf1=jnp.stack(Wf1).astype(jnp.bfloat16),
        Wf2=jnp.stack(Wf2).astype(jnp.bfloat16),
        Vec=jnp.stack(Vec),                            # (L, NV, dmax) f32
    )


# ----------------------------- pure-JAX references -----------------------------
def _ln_ref(x, gamma, beta):
    mu = jnp.mean(x, axis=-1, keepdims=True)
    var = jnp.mean((x - mu) ** 2, axis=-1, keepdims=True)
    return (x - mu) / jnp.sqrt(var + LN_EPS) * gamma + beta


def reference_forward(feats, params):
    """Module-faithful f32 reference (unfused fc_v/fc_o, explicit concat, HIGHEST)."""
    dot = lambda a, b: jnp.dot(a, b, precision=HIGHEST)
    x = dot(feats, params["proj_w"]) + params["proj_b"]
    for lp in params["layers"]:
        src = x
        v = dot(src, lp["wv"]) + lp["bv"]
        a = dot(v, lp["wo"]) + lp["bo"]
        cat = jnp.concatenate([a, src], axis=1)
        x1 = jax.nn.sigmoid(dot(cat, lp["wl1"]) + lp["bl1"])
        x2 = dot(cat, lp["wl2"]) + lp["bl2"]
        h = _ln_ref(src + x1 * x2, lp["g1"], lp["be1"])
        f = jnp.maximum(dot(h, lp["wf1"]) + lp["bf1"], 0.0)
        f = jnp.maximum(dot(f, lp["wf2"]) + lp["bf2"], 0.0)
        x = _ln_ref(h + f, lp["g2"], lp["be2"])
    return x[:, None, :]


def matched_reference(feats, packed, *, hid, pf):
    """Numerics-matched reference: same folded bf16 weights / bf16 dot inputs as the
    kernel, so it validates the Pallas plumbing at tight tolerance."""
    mdot = lambda a, w: jnp.dot(a.astype(jnp.bfloat16), w,
                                preferred_element_type=jnp.float32)
    x = mdot(feats, packed["proj_w"]) + packed["proj_b"]
    for l in range(packed["W_att"].shape[0]):
        vec = packed["Vec"][l]
        b_att = vec[_BATT, :2 * hid]
        bf1, bf2 = vec[_BF1, :pf], vec[_BF2, :hid]
        g1, be1 = vec[_G1, :hid], vec[_BE1, :hid]
        g2, be2 = vec[_G2, :hid], vec[_BE2, :hid]
        src = x
        g = mdot(src, packed["W_att"][l]) + b_att
        attn = jax.nn.sigmoid(g[:, :hid]) * g[:, hid:]
        h = _ln_ref(src + attn, g1, be1)
        f = jnp.maximum(mdot(h, packed["Wf1"][l]) + bf1, 0.0)
        f = jnp.maximum(mdot(f, packed["Wf2"][l]) + bf2, 0.0)
        x = _ln_ref(h + f, g2, be2)
    return x[:, None, :]


# ----------------------------- main --------------------------------------------
if __name__ == "__main__":
    # Lane-dense small config (hid/pf multiples of 128) so stores are unmasked.
    B, HID, N_HEADS, PF, N_LAYERS = 2, 128, 4, 256, 2
    assert HID % N_HEADS == 0

    key = jax.random.PRNGKey(0)
    k_feat, k_par = jax.random.split(key)
    # TODO(synk): clip_model.encode_image (pretrained CLIP visual backbone) is external;
    # its (B, 512) float32 feature output is taken directly as the kernel input.
    feats = jax.random.normal(k_feat, (B, 512), jnp.float32)

    params = init_params(k_par, HID, PF, N_LAYERS)
    packed = pack_params(params, HID, PF)

    out = clip_encoder_forward(feats, packed, hid=HID, pf=PF, is_attention=True)
    out = jax.block_until_ready(out)
    assert out.shape == (B, 1, HID) and out.dtype == jnp.float32

    # 1) Tight check vs. a reference using the identical folded bf16 numerics
    #    (validates the Pallas kernel / BlockSpec plumbing).
    ref_matched = matched_reference(feats, packed, hid=HID, pf=PF)
    np.testing.assert_allclose(np.asarray(out), np.asarray(ref_matched),
                               rtol=1e-3, atol=1e-3)

    # 2) Relaxed check vs. the module-faithful f32 reference (tolerance intentionally
    #    loosened for the bf16 weight / mixed-precision MXU path).
    ref_f32 = reference_forward(feats, params)
    np.testing.assert_allclose(np.asarray(out), np.asarray(ref_f32),
                               rtol=5e-2, atol=5e-2)

    print("KERNEL_OK")
</pallas_src>

<mosaic_0001>
module attributes {stable_mosaic.version = 11 : i64} {
  func.func @_encoder_kernel(%arg0: i32, %arg1: i32, %arg2: memref<8x512xf32, #tpu.memory_space<vmem>>, %arg3: memref<512x128xbf16, #tpu.memory_space<vmem>>, %arg4: memref<1x128xf32, #tpu.memory_space<vmem>>, %arg5: memref<1x128x256xbf16, #tpu.memory_space<vmem>>, %arg6: memref<1x128x256xbf16, #tpu.memory_space<vmem>>, %arg7: memref<1x256x128xbf16, #tpu.memory_space<vmem>>, %arg8: memref<1x7x256xf32, #tpu.memory_space<vmem>>, %arg9: memref<8x128xf32, #tpu.memory_space<vmem>>) attributes {dimension_semantics = [#tpu.dimension_semantics<parallel>, #tpu.dimension_semantics<arbitrary>], iteration_bounds = array<i64: 1, 2>, scalar_prefetch = 0 : i64, scratch_operands = 0 : i64, tpu.core_type = #tpu.core_type<tc>, window_params = [{transform_indices = @transform_0, window_bounds = array<i64: 8, 512>}, {pipeline_mode = #tpu.pipeline_mode<synchronous>, transform_indices = @transform_1, window_bounds = array<i64: 512, 128>}, {pipeline_mode = #tpu.pipeline_mode<synchronous>, transform_indices = @transform_2, window_bounds = array<i64: 1, 128>}, {transform_indices = @transform_3, window_bounds = array<i64: 1, 128, 256>}, {transform_indices = @transform_4, window_bounds = array<i64: 1, 128, 256>}, {transform_indices = @transform_5, window_bounds = array<i64: 1, 256, 128>}, {transform_indices = @transform_6, window_bounds = array<i64: 1, 7, 256>}, {transform_indices = @transform_7, window_bounds = array<i64: 8, 128>}]} {
    %c0_i32 = arith.constant 0 : i32
    %0 = arith.cmpi eq, %arg1, %c0_i32 : i32
    %1 = arith.extui %0 : i1 to i32
    %c0_i32_0 = arith.constant 0 : i32
    %2 = arith.cmpi ne, %1, %c0_i32_0 : i32
    scf.if %2 {
      %c0_31 = arith.constant 0 : index
      %c0_32 = arith.constant 0 : index
      %86 = vector.load %arg2[%c0_31, %c0_32] : memref<8x512xf32, #tpu.memory_space<vmem>>, vector<8x512xf32>
      %c0_33 = arith.constant 0 : index
      %c0_34 = arith.constant 0 : index
      %87 = vector.load %arg3[%c0_33, %c0_34] : memref<512x128xbf16, #tpu.memory_space<vmem>>, vector<512x128xbf16>
      %88 = arith.truncf %86 : vector<8x512xf32> to vector<8x512xbf16>
      %cst_35 = arith.constant dense<0.000000e+00> : vector<8x128xf32>
      %89 = tpu.matmul %88, %87, %cst_35 {dimension_numbers = #tpu.dot_dimension_numbers<[1], [0], [0], [1], [0, 0, 1, 1], [], []>} : vector<8x512xbf16>, vector<512x128xbf16>, vector<8x128xf32> -> vector<8x128xf32>
      %c0_36 = arith.constant 0 : index
      %c0_37 = arith.constant 0 : index
      %90 = vector.load %arg4[%c0_36, %c0_37] : memref<1x128xf32, #tpu.memory_space<vmem>>, vector<1x128xf32>
      %91 = vector.broadcast %90 : vector<1x128xf32> to vector<8x128xf32>
      %92 = arith.addf %89, %91 : vector<8x128xf32>
      %c0_38 = arith.constant 0 : index
      %c0_39 = arith.constant 0 : index
      %93 = vector.load %arg9[%c0_38, %c0_39] : memref<8x128xf32, #tpu.memory_space<vmem>>, vector<8x128xf32>
      tpu.vector_store %arg9[%c0_38, %c0_39], %92 {strides = array<i32>} : memref<8x128xf32, #tpu.memory_space<vmem>>, vector<8x128xf32>,
    } else {
    }
    %c0 = arith.constant 0 : index
    %c0_1 = arith.constant 0 : index
    %3 = vector.load %arg9[%c0, %c0_1] : memref<8x128xf32, #tpu.memory_space<vmem>>, vector<8x128xf32>
    %c0_2 = arith.constant 0 : index
    %c0_3 = arith.constant 0 : index
    %c0_4 = arith.constant 0 : index
    %4 = vector.load %arg8[%c0_2, %c0_3, %c0_4] : memref<1x7x256xf32, #tpu.memory_space<vmem>>, vector<1x7x256xf32>
    %5 = vector.shape_cast %4 : vector<1x7x256xf32> to vector<7x256xf32>
    %6 = vector.extract_strided_slice %5 {offsets = [0, 0], sizes = [1, 256], strides = [1, 1]} : vector<7x256xf32> to vector<1x256xf32>
    %7 = vector.extract_strided_slice %5 {offsets = [1, 0], sizes = [1, 256], strides = [1, 1]} : vector<7x256xf32> to vector<1x256xf32>
    %8 = vector.extract_strided_slice %5 {offsets = [2, 0], sizes = [1, 128], strides = [1, 1]} : vector<7x256xf32> to vector<1x128xf32>
    %9 = vector.extract_strided_slice %5 {offsets = [3, 0], sizes = [1, 128], strides = [1, 1]} : vector<7x256xf32> to vector<1x128xf32>
    %10 = vector.extract_strided_slice %5 {offsets = [4, 0], sizes = [1, 128], strides = [1, 1]} : vector<7x256xf32> to vector<1x128xf32>
    %11 = vector.extract_strided_slice %5 {offsets = [5, 0], sizes = [1, 128], strides = [1, 1]} : vector<7x256xf32> to vector<1x128xf32>
    %12 = vector.extract_strided_slice %5 {offsets = [6, 0], sizes = [1, 128], strides = [1, 1]} : vector<7x256xf32> to vector<1x128xf32>
    %c0_5 = arith.constant 0 : index
    %c0_6 = arith.constant 0 : index
    %c0_7 = arith.constant 0 : index
    %13 = vector.load %arg5[%c0_5, %c0_6, %c0_7] : memref<1x128x256xbf16, #tpu.memory_space<vmem>>, vector<1x128x256xbf16>
    %14 = vector.shape_cast %13 : vector<1x128x256xbf16> to vector<128x256xbf16>
    %15 = arith.truncf %3 : vector<8x128xf32> to vector<8x128xbf16>
    %cst = arith.constant dense<0.000000e+00> : vector<8x256xf32>
    %16 = tpu.matmul %15, %14, %cst {dimension_numbers = #tpu.dot_dimension_numbers<[1], [0], [0], [1], [0, 0, 1, 1], [], []>} : vector<8x128xbf16>, vector<128x256xbf16>, vector<8x256xf32> -> vector<8x256xf32>
    %17 = vector.broadcast %6 : vector<1x256xf32> to vector<8x256xf32>
    %18 = arith.addf %16, %17 : vector<8x256xf32>
    %19 = vector.extract_strided_slice %18 {offsets = [0, 0], sizes = [8, 128], strides = [1, 1]} : vector<8x256xf32> to vector<8x128xf32>
    %20 = arith.negf %19 : vector<8x128xf32>
    %21 = math.exp %20 : vector<8x128xf32>
    %cst_8 = arith.constant 1.000000e+00 : f32
    %22 = vector.broadcast %cst_8 : f32 to vector<8x128xf32>
    %23 = arith.addf %22, %21 : vector<8x128xf32>
    %24 = arith.divf %22, %23 : vector<8x128xf32>
    %25 = vector.extract_strided_slice %18 {offsets = [0, 128], sizes = [8, 128], strides = [1, 1]} : vector<8x256xf32> to vector<8x128xf32>
    %26 = arith.mulf %24, %25 : vector<8x128xf32>
    %27 = arith.addf %3, %26 : vector<8x128xf32>
    %cst_9 = arith.constant dense<0.000000e+00> : vector<8xf32>
    %28 = vector.multi_reduction <add>, %27, %cst_9 [1] : vector<8x128xf32> to vector<8xf32>
    %29 = vector.shape_cast %28 : vector<8xf32> to vector<8x1xf32>
    %cst_10 = arith.constant 1.280000e+02 : f32
    %30 = vector.broadcast %cst_10 : f32 to vector<8x1xf32>
    %31 = arith.divf %29, %30 : vector<8x1xf32>
    %32 = vector.broadcast %31 : vector<8x1xf32> to vector<8x128xf32>
    %33 = arith.subf %27, %32 : vector<8x128xf32>
    %34 = arith.mulf %33, %33 : vector<8x128xf32>
    %cst_11 = arith.constant dense<0.000000e+00> : vector<8xf32>
    %35 = vector.multi_reduction <add>, %34, %cst_11 [1] : vector<8x128xf32> to vector<8xf32>
    %36 = vector.shape_cast %35 : vector<8xf32> to vector<8x1xf32>
    %cst_12 = arith.constant 1.280000e+02 : f32
    %37 = vector.broadcast %cst_12 : f32 to vector<8x1xf32>
    %38 = arith.divf %36, %37 : vector<8x1xf32>
    %cst_13 = arith.constant 9.99999974E-6 : f32
    %39 = vector.broadcast %cst_13 : f32 to vector<8x1xf32>
    %40 = arith.addf %38, %39 : vector<8x1xf32>
    %41 = math.rsqrt %40 : vector<8x1xf32>
    %42 = vector.broadcast %41 : vector<8x1xf32> to vector<8x128xf32>
    %43 = arith.mulf %33, %42 : vector<8x128xf32>
    %44 = vector.broadcast %9 : vector<1x128xf32> to vector<8x128xf32>
    %45 = arith.mulf %43, %44 : vector<8x128xf32>
    %46 = vector.broadcast %10 : vector<1x128xf32> to vector<8x128xf32>
    %47 = arith.addf %45, %46 : vector<8x128xf32>
    %c0_14 = arith.constant 0 : index
    %c0_15 = arith.constant 0 : index
    %c0_16 = arith.constant 0 : index
    %48 = vector.load %arg6[%c0_14, %c0_15, %c0_16] : memref<1x128x256xbf16, #tpu.memory_space<vmem>>, vector<1x128x256xbf16>
    %49 = vector.shape_cast %48 : vector<1x128x256xbf16> to vector<128x256xbf16>
    %50 = arith.truncf %47 : vector<8x128xf32> to vector<8x128xbf16>
    %cst_17 = arith.constant dense<0.000000e+00> : vector<8x256xf32>
    %51 = tpu.matmul %50, %49, %cst_17 {dimension_numbers = #tpu.dot_dimension_numbers<[1], [0], [0], [1], [0, 0, 1, 1], [], []>} : vector<8x128xbf16>, vector<128x256xbf16>, vector<8x256xf32> -> vector<8x256xf32>
    %52 = vector.broadcast %7 : vector<1x256xf32> to vector<8x256xf32>
    %53 = arith.addf %51, %52 : vector<8x256xf32>
    %cst_18 = arith.constant 0.000000e+00 : f32
    %54 = vector.broadcast %cst_18 : f32 to vector<8x256xf32>
    %55 = arith.maximumf %53, %54 : vector<8x256xf32>
    %c0_19 = arith.constant 0 : index
    %c0_20 = arith.constant 0 : index
    %c0_21 = arith.constant 0 : index
    %56 = vector.load %arg7[%c0_19, %c0_20, %c0_21] : memref<1x256x128xbf16, #tpu.memory_space<vmem>>, vector<1x256x128xbf16>
    %57 = vector.shape_cast %56 : vector<1x256x128xbf16> to vector<256x128xbf16>
    %58 = arith.truncf %55 : vector<8x256xf32> to vector<8x256xbf16>
    %cst_22 = arith.constant dense<0.000000e+00> : vector<8x128xf32>
    %59 = tpu.matmul %58, %57, %cst_22 {dimension_numbers = #tpu.dot_dimension_numbers<[1], [0], [0], [1], [0, 0, 1, 1], [], []>} : vector<8x256xbf16>, vector<256x128xbf16>, vector<8x128xf32> -> vector<8x128xf32>
    %60 = vector.broadcast %8 : vector<1x128xf32> to vector<8x128xf32>
    %61 = arith.addf %59, %60 : vector<8x128xf32>
    %cst_23 = arith.constant 0.000000e+00 : f32
    %62 = vector.broadcast %cst_23 : f32 to vector<8x128xf32>
    %63 = arith.maximumf %61, %62 : vector<8x128xf32>
    %64 = arith.addf %47, %63 : vector<8x128xf32>
    %cst_24 = arith.constant dense<0.000000e+00> : vector<8xf32>
    %65 = vector.multi_reduction <add>, %64, %cst_24 [1] : vector<8x128xf32> to vector<8xf32>
    %66 = vector.shape_cast %65 : vector<8xf32> to vector<8x1xf32>
    %cst_25 = arith.constant 1.280000e+02 : f32
    %67 = vector.broadcast %cst_25 : f32 to vector<8x1xf32>
    %68 = arith.divf %66, %67 : vector<8x1xf32>
    %69 = vector.broadcast %68 : vector<8x1xf32> to vector<8x128xf32>
    %70 = arith.subf %64, %69 : vector<8x128xf32>
    %71 = arith.mulf %70, %70 : vector<8x128xf32>
    %cst_26 = arith.constant dense<0.000000e+00> : vector<8xf32>
    %72 = vector.multi_reduction <add>, %71, %cst_26 [1] : vector<8x128xf32> to vector<8xf32>
    %73 = vector.shape_cast %72 : vector<8xf32> to vector<8x1xf32>
    %cst_27 = arith.constant 1.280000e+02 : f32
    %74 = vector.broadcast %cst_27 : f32 to vector<8x1xf32>
    %75 = arith.divf %73, %74 : vector<8x1xf32>
    %cst_28 = arith.constant 9.99999974E-6 : f32
    %76 = vector.broadcast %cst_28 : f32 to vector<8x1xf32>
    %77 = arith.addf %75, %76 : vector<8x1xf32>
    %78 = math.rsqrt %77 : vector<8x1xf32>
    %79 = vector.broadcast %78 : vector<8x1xf32> to vector<8x128xf32>
    %80 = arith.mulf %70, %79 : vector<8x128xf32>
    %81 = vector.broadcast %11 : vector<1x128xf32> to vector<8x128xf32>
    %82 = arith.mulf %80, %81 : vector<8x128xf32>
    %83 = vector.broadcast %12 : vector<1x128xf32> to vector<8x128xf32>
    %84 = arith.addf %82, %83 : vector<8x128xf32>
    %c0_29 = arith.constant 0 : index
    %c0_30 = arith.constant 0 : index
    %85 = vector.load %arg9[%c0_29, %c0_30] : memref<8x128xf32, #tpu.memory_space<vmem>>, vector<8x128xf32>
    tpu.vector_store %arg9[%c0_29, %c0_30], %84 {strides = array<i32>} : memref<8x128xf32, #tpu.memory_space<vmem>>, vector<8x128xf32>,
    return
  }
  func.func @transform_0(%arg0: i32, %arg1: i32) -> (i32, i32) {
    %c0_i32 = arith.constant 0 : i32
    %c0_i32_0 = arith.constant 0 : i32
    return %arg0, %c0_i32 : i32, i32
  }
  func.func @transform_1(%arg0: i32, %arg1: i32) -> (i32, i32) {
    %c0_i32 = arith.constant 0 : i32
    %c0_i32_0 = arith.constant 0 : i32
    %c0_i32_1 = arith.constant 0 : i32
    return %c0_i32, %c0_i32_0 : i32, i32
  }
  func.func @transform_2(%arg0: i32, %arg1: i32) -> (i32, i32) {
    %c0_i32 = arith.constant 0 : i32
    %c0_i32_0 = arith.constant 0 : i32
    %c0_i32_1 = arith.constant 0 : i32
    return %c0_i32, %c0_i32_0 : i32, i32
  }
  func.func @transform_3(%arg0: i32, %arg1: i32) -> (i32, i32, i32) {
    %c0_i32 = arith.constant 0 : i32
    %c0_i32_0 = arith.constant 0 : i32
    %c0_i32_1 = arith.constant 0 : i32
    return %arg1, %c0_i32, %c0_i32_0 : i32, i32, i32
  }
  func.func @transform_4(%arg0: i32, %arg1: i32) -> (i32, i32, i32) {
    %c0_i32 = arith.constant 0 : i32
    %c0_i32_0 = arith.constant 0 : i32
    %c0_i32_1 = arith.constant 0 : i32
    return %arg1, %c0_i32, %c0_i32_0 : i32, i32, i32
  }
  func.func @transform_5(%arg0: i32, %arg1: i32) -> (i32, i32, i32) {
    %c0_i32 = arith.constant 0 : i32
    %c0_i32_0 = arith.constant 0 : i32
    %c0_i32_1 = arith.constant 0 : i32
    return %arg1, %c0_i32, %c0_i32_0 : i32, i32, i32
  }
  func.func @transform_6(%arg0: i32, %arg1: i32) -> (i32, i32, i32) {
    %c0_i32 = arith.constant 0 : i32
    %c0_i32_0 = arith.constant 0 : i32
    %c0_i32_1 = arith.constant 0 : i32
    return %arg1, %c0_i32, %c0_i32_0 : i32, i32, i32
  }
  func.func @transform_7(%arg0: i32, %arg1: i32) -> (i32, i32) {
    %c0_i32 = arith.constant 0 : i32
    %c0_i32_0 = arith.constant 0 : i32
    return %arg0, %c0_i32 : i32, i32
  }
}

</mosaic_0001>

<llo_original>
// kernel: tpu_custom_call.1
$region0: #{tpu_custom_call.1}
  #allocation0 [shape = 'u32[]', space=smem, size = 0x4, offset = 0x4, fixed_abs, tag = 'smem constant byte address 0x4 - core index']
  #allocation1 [shape = 'u32[144,128]{1,0:T(1,128)}', space=vmem, size = 0x12000, scoped, tag = 'internal scratch']
  %s0 = inlined_call_operand.vmem [shape: f32[8,512], index: 0, kind: input, shape index: {}]
  %s1 = inlined_call_operand.hbm [shape: bf16[512,128], index: 1, kind: input, shape index: {}]
  %s2 = inlined_call_operand.vmem [shape: f32[1,128], index: 2, kind: input, shape index: {}]
  %s3 = inlined_call_operand.hbm [shape: bf16[2,128,256], index: 3, kind: input, shape index: {}]
  %s4 = inlined_call_operand.hbm [shape: bf16[2,128,256], index: 4, kind: input, shape index: {}]
  %s5 = inlined_call_operand.hbm [shape: bf16[2,256,128], index: 5, kind: input, shape index: {}]
  %s6 = inlined_call_operand.vmem [shape: f32[2,7,256], index: 6, kind: input, shape index: {}]
  %s7 = inlined_call_operand.hbm [shape: f32[8,128], index: 7, kind: output, shape index: {}]
  %s8 = sld [smem:[#allocation0]]
  $region81: #{tpu_custom_call.1} parent=0
    _
  %s10 = ssub.s32 1, %s8
  %s11 = scalar_select 0, %s10, %s8
  $region1: #{tpu_custom_call.1} parent=0
    #allocation2 [shape = 'u8[131072]{0}', space=vmem, size = 0x20000, scoped, tag = 'input window, operand 1, single buffered']
    #allocation3 [shape = 's32[2]{0}', space=sflag, size = 0x8, scoped, tag = 'scoped memory for tpu_custom_call.1']
    #allocation4 [shape = 's32[2]{0}', space=sflag, size = 0x8, scoped, tag = 'scoped memory for tpu_custom_call.1']
    #allocation5 [shape = 'u8[131072]{0}', space=vmem, size = 0x20000, scoped, tag = 'input window, operand 3']
    #allocation6 [shape = 's32[2]{0}', space=sflag, size = 0x8, scoped, tag = 'scoped memory for tpu_custom_call.1']
    #allocation7 [shape = 'u8[131072]{0}', space=vmem, size = 0x20000, scoped, tag = 'input window, operand 4']
    #allocation8 [shape = 'u8[131072]{0}', space=vmem, size = 0x20000, scoped, tag = 'input window, operand 5']
    #allocation9 [shape = 's32[2]{0}', space=sflag, size = 0x8, scoped, tag = 'scoped memory for tpu_custom_call.1']
    #allocation10 [shape = 'u8[4096]{0}', space=vmem, size = 0x1000, scoped, tag = 'output window, operand 0, single buffered']
    %12 = vsyncpa [#allocation3], 0
    %13 = vsyncpa [#allocation6], 0
    %s14 = scalar_lea.sflag [#allocation6], 1
    %15 = vsyncpa %s14, 0
    %16 = vsyncpa [#allocation9], 0
    %s17 = scalar_lea.sflag [#allocation9], 1
    %18 = vsyncpa %s17, 0
    %19 = vsyncpa [#allocation4], 0
    loop: start=0, step=1, limit=4
    $region2: #{tpu_custom_call.1} parent=1 // loop_pre_header
      _
    $region3: #{tpu_custom_call.1} parent=1 // loop_header
      %s21 = sphi 0, %s25
      %p22 = scmp.ge.s32.totalorder %s21, 4
      %s28 = sphi 0, %s40
      %s29 = sphi 0, %s36
      %s30 = sphi 0, %s28
      %s31 = sphi 0, %s29
      %s32 = sphi 0, %s30
      %s33 = sphi 0, %s31
      %s43 = sphi 0, %s45
      %s46 = sphi 0, %s43
      %s47 = sphi 0, %s46
      %s63 = sphi 0, %s47
      %s67 = sphi 0, %s67
      %s69 = sphi 0, %s67
      %s70 = sphi 0, %s69
      %s84 = sphi 0, %s70
      %s88 = sphi 0, %s88
      %s90 = sphi 0, %s88
      %s91 = sphi 0, %s90
      %s105 = sphi 0, %s91
      %s111 = sphi 0, %s113
      %s114 = sphi 0, %s111
      %s115 = sphi 0, %s114
      %s131 = sphi 0, %s115
      %s137 = sphi 0, %s139
      %s140 = sphi 0, %s137
      %s141 = sphi 0, %s140
      %s157 = sphi 0, %s141
      %s163 = sphi 0, %s165
      %s166 = sphi 0, %s163
      %s167 = sphi 0, %s166
      %s183 = sphi 0, %s167
      %s189 = sphi 0, %s191
      %s192 = sphi 0, %s189
      %s193 = sphi 0, %s192
      %s209 = sphi 0, %s193
      %s215 = sphi 0, %s217
      %s218 = sphi 0, %s215
      %s219 = sphi 0, %s218
      %s235 = sphi 0, %s219
    $region4: #{tpu_custom_call.1} parent=1 // loop_header_branch
      %24 = sbr.rel (%p22) target = $region8
    $region5: #{tpu_custom_call.1} parent=1 // loop_body
      %s26 = ssub.s32 %s21, 1
      %s27 = ssub.s32 %s21, 2
      %s34 = sadd.s32 1, %s29
      %p35 = scmp.ge.s32.totalorder %s34, 2
      %s36 = scalar_select %p35, 0, %s34
      %s37 = sadd.s32 1, %s28
      %s38 = scalar_select %p35, %s37, %s28
      %p39 = scmp.ge.s32.totalorder %s38, 1
      %s40 = scalar_select %p39, 0, %s38
      %s41 = ssub.s32 %s28, %s40
      %p42 = scmp.eq.s32.totalorder %s41, 0
      %s44 = sadd.s32 %s43, 1
      %s45 = scalar_select %p42, %s43, %s44
      %p48 = pneg %p42
      %p49 = scmp.eq.s32.totalorder %s21, 1
      %p50 = por %p48, %p49
      %p51 = scmp.ne.s32.totalorder %s43, %s46
      %p52 = scmp.eq.s32.totalorder %s21, 0
      %p53 = por %p51, %p52
      %p54 = scmp.ne.s32.totalorder %s43, %s46
      %p55 = scmp.eq.s32.totalorder %s26, 1
      %p56 = por %p54, %p55
      %p57 = scmp.ne.s32.totalorder %s46, %s47
      %p58 = scmp.eq.s32.totalorder %s26, 0
      %p59 = por %p57, %p58
      %p60 = scmp.ne.s32.totalorder %s46, %s47
      %p61 = scmp.eq.s32.totalorder %s27, 1
      %p62 = por %p60, %p61
      %p64 = scmp.ne.s32.totalorder %s47, %s63
      %p65 = scmp.eq.s32.totalorder %s27, 0
      %p66 = por %p64, %p65
      %s68 = sadd.s32 %s67, 1
      %p71 = scmp.eq.s32.totalorder %s21, 1
      %p72 = scmp.ne.s32.totalorder %s67, %s69
      %p73 = scmp.eq.s32.totalorder %s21, 0
      %p74 = por %p72, %p73
      %p75 = scmp.ne.s32.totalorder %s67, %s69
      %p76 = scmp.eq.s32.totalorder %s26, 1
      %p77 = por %p75, %p76
      %p78 = scmp.ne.s32.totalorder %s69, %s70
      %p79 = scmp.eq.s32.totalorder %s26, 0
      %p80 = por %p78, %p79
      %p81 = scmp.ne.s32.totalorder %s69, %s70
      %p82 = scmp.eq.s32.totalorder %s27, 1
      %p83 = por %p81, %p82
      %p85 = scmp.ne.s32.totalorder %s70, %s84
      %p86 = scmp.eq.s32.totalorder %s27, 0
      %p87 = por %p85, %p86
      %s89 = sadd.s32 %s88, 1
      %p92 = scmp.eq.s32.totalorder %s21, 1
      %p93 = scmp.ne.s32.totalorder %s88, %s90
      %p94 = scmp.eq.s32.totalorder %s21, 0
      %p95 = por %p93, %p94
      %p96 = scmp.ne.s32.totalorder %s88, %s90
      %p97 = scmp.eq.s32.totalorder %s26, 1
      %p98 = por %p96, %p97
      %p99 = scmp.ne.s32.totalorder %s90, %s91
      %p100 = scmp.eq.s32.totalorder %s26, 0
      %p101 = por %p99, %p100
      %p102 = scmp.ne.s32.totalorder %s90, %s91
      %p103 = scmp.eq.s32.totalorder %s27, 1
      %p104 = por %p102, %p103
      %p106 = scmp.ne.s32.totalorder %s91, %s105
      %p107 = scmp.eq.s32.totalorder %s27, 0
      %p108 = por %p106, %p107
      %s109 = ssub.s32 %s29, %s36
      %p110 = scmp.eq.s32.totalorder %s109, 0
      %s112 = sadd.s32 %s111, 1
      %s113 = scalar_select %p110, %s111, %s112
      %p116 = pneg %p110
      %p117 = scmp.eq.s32.totalorder %s21, 1
      %p118 = por %p116, %p117
      %p119 = scmp.ne.s32.totalorder %s111, %s114
      %p120 = scmp.eq.s32.totalorder %s21, 0
      %p121 = por %p119, %p120
      %p122 = scmp.ne.s32.totalorder %s111, %s114
      %p123 = scmp.eq.s32.totalorder %s26, 1
      %p124 = por %p122, %p123
      %p125 = scmp.ne.s32.totalorder %s114, %s115
      %p126 = scmp.eq.s32.totalorder %s26, 0
      %p127 = por %p125, %p126
      %p128 = scmp.ne.s32.totalorder %s114, %s115
      %p129 = scmp.eq.s32.totalorder %s27, 1
      %p130 = por %p128, %p129
      %p132 = scmp.ne.s32.totalorder %s115, %s131
      %p133 = scmp.eq.s32.totalorder %s27, 0
      %p134 = por %p132, %p133
      %s135 = ssub.s32 %s29, %s36
      %p136 = scmp.eq.s32.totalorder %s135, 0
      %s138 = sadd.s32 %s137, 1
      %s139 = scalar_select %p136, %s137, %s138
      %p142 = pneg %p136
      %p143 = scmp.eq.s32.totalorder %s21, 1
      %p144 = por %p142, %p143
      %p145 = scmp.ne.s32.totalorder %s137, %s140
      %p146 = scmp.eq.s32.totalorder %s21, 0
      %p147 = por %p145, %p146
      %p148 = scmp.ne.s32.totalorder %s137, %s140
      %p149 = scmp.eq.s32.totalorder %s26, 1
      %p150 = por %p148, %p149
      %p151 = scmp.ne.s32.totalorder %s140, %s141
      %p152 = scmp.eq.s32.totalorder %s26, 0
      %p153 = por %p151, %p152
      %p154 = scmp.ne.s32.totalorder %s140, %s141
      %p155 = scmp.eq.s32.totalorder %s27, 1
      %p156 = por %p154, %p155
      %p158 = scmp.ne.s32.totalorder %s141, %s157
      %p159 = scmp.eq.s32.totalorder %s27, 0
      %p160 = por %p158, %p159
      %s161 = ssub.s32 %s29, %s36
      %p162 = scmp.eq.s32.totalorder %s161, 0
      %s164 = sadd.s32 %s163, 1
      %s165 = scalar_select %p162, %s163, %s164
      %p168 = pneg %p162
      %p169 = scmp.eq.s32.totalorder %s21, 1
      %p170 = por %p168, %p169
      %p171 = scmp.ne.s32.totalorder %s163, %s166
      %p172 = scmp.eq.s32.totalorder %s21, 0
      %p173 = por %p171, %p172
      %p174 = scmp.ne.s32.totalorder %s163, %s166
      %p175 = scmp.eq.s32.totalorder %s26, 1
      %p176 = por %p174, %p175
      %p177 = scmp.ne.s32.totalorder %s166, %s167
      %p178 = scmp.eq.s32.totalorder %s26, 0
      %p179 = por %p177, %p178
      %p180 = scmp.ne.s32.totalorder %s166, %s167
      %p181 = scmp.eq.s32.totalorder %s27, 1
      %p182 = por %p180, %p181
      %p184 = scmp.ne.s32.totalorder %s167, %s183
      %p185 = scmp.eq.s32.totalorder %s27, 0
      %p186 = por %p184, %p185
      %s187 = ssub.s32 %s29, %s36
      %p188 = scmp.eq.s32.totalorder %s187, 0
      %s190 = sadd.s32 %s189, 1
      %s191 = scalar_select %p188, %s189, %s190
      %p194 = pneg %p188
      %p195 = scmp.eq.s32.totalorder %s21, 1
      %p196 = por %p194, %p195
      %p197 = scmp.ne.s32.totalorder %s189, %s192
      %p198 = scmp.eq.s32.totalorder %s21, 0
      %p199 = por %p197, %p198
      %p200 = scmp.ne.s32.totalorder %s189, %s192
      %p201 = scmp.eq.s32.totalorder %s26, 1
      %p202 = por %p200, %p201
      %p203 = scmp.ne.s32.totalorder %s192, %s193
      %p204 = scmp.eq.s32.totalorder %s26, 0
      %p205 = por %p203, %p204
      %p206 = scmp.ne.s32.totalorder %s192, %s193
      %p207 = scmp.eq.s32.totalorder %s27, 1
      %p208 = por %p206, %p207
      %p210 = scmp.ne.s32.totalorder %s193, %s209
      %p211 = scmp.eq.s32.totalorder %s27, 0
      %p212 = por %p210, %p211
      %s213 = ssub.s32 %s28, %s40
      %p214 = scmp.eq.s32.totalorder %s213, 0
      %s216 = sadd.s32 %s215, 1
      %s217 = scalar_select %p214, %s215, %s216
      %p220 = pneg %p214
      %p221 = scmp.eq.s32.totalorder %s21, 1
      %p222 = por %p220, %p221
      %p223 = scmp.ne.s32.totalorder %s215, %s218
      %p224 = scmp.eq.s32.totalorder %s21, 0
      %p225 = por %p223, %p224
      %p226 = scmp.ne.s32.totalorder %s215, %s218
      %p227 = scmp.eq.s32.totalorder %s26, 1
      %p228 = por %p226, %p227
      %p229 = scmp.ne.s32.totalorder %s218, %s219
      %p230 = scmp.eq.s32.totalorder %s26, 0
      %p231 = por %p229, %p230
      %p232 = scmp.ne.s32.totalorder %s218, %s219
      %p233 = scmp.eq.s32.totalorder %s27, 1
      %p234 = por %p232, %p233
      %p236 = scmp.ne.s32.totalorder %s219, %s235
      %p237 = scmp.eq.s32.totalorder %s27, 0
      %p238 = por %p236, %p237
      %p239 = scmp.le.s32.totalorder 1, %s21
      %p240 = scmp.lt.s32.totalorder %s21, 3
      %p241 = pnand %p239, %p240
      %p242 = pneg %p241
      // Predicated region
      $region9: #{tpu_custom_call.1} parent=5 // pred_check
        _
      $region10: #{tpu_custom_call.1} parent=5 // pred_check_branch
        %244 = sbr.rel (%p241) target = $region12
      $region11: #{tpu_custom_call.1} parent=5 // pred_region
        %s245 = ssub.s32 %s21, 1
        // Predicated region
        $region13: #{tpu_custom_call.1} parent=11 // pred_check
          %p246 = pneg %p59
        $region14: #{tpu_custom_call.1} parent=11 // pred_check_branch
          %248 = sbr.rel (%p246) target = $region16
        $region15: #{tpu_custom_call.1} parent=11 // pred_region
          %p249 = scmp.lt.s32.totalorder %s30, 0
          %s250 = scalar_select %p249, %s30, 0
          %s251 = smul.addr %s250, 4
          %s252 = smul.addr %s251, 8
          %s253 = scalar_lea.vmem %s0, %s252
        $region16: #{tpu_custom_call.1} parent=11 // pred_fallthru
          _
        // Predicated region
        $region17: #{tpu_custom_call.1} parent=11 // pred_check
          %p254 = pneg %p80
        $region18: #{tpu_custom_call.1} parent=11 // pred_check_branch
          %256 = sbr.rel (%p254) target = $region20
        $region19: #{tpu_custom_call.1} parent=11 // pred_region
          %s258 = ssub.s32 4096, 4096
          %259 = vsyncadd [#allocation3], %s258
          %s260 = sshll.u32 [#allocation2], 4
          %s261 = int_to_ptr.vmem [resolvable:$true] %s260
          %266 = dma.hbm_to_vmem [thread:$0]  %s1, 4096, %s261, [#allocation3], 64, 64, 4
        $region20: #{tpu_custom_call.1} parent=11 // pred_fallthru
          _
        // Predicated region
        $region21: #{tpu_custom_call.1} parent=11 // pred_check
          %p267 = pneg %p101
        $region22: #{tpu_custom_call.1} parent=11 // pred_check_branch
          %269 = sbr.rel (%p267) target = $region24
        $region23: #{tpu_custom_call.1} parent=11 // pred_region
          _
        $region24: #{tpu_custom_call.1} parent=11 // pred_fallthru
          _
      $region12: #{tpu_custom_call.1} parent=5 // pred_fallthru
        _
      %p270 = scmp.lt.s32.totalorder %s21, 2
      // Predicated region
      $region25: #{tpu_custom_call.1} parent=5 // pred_check
        %p271 = pneg %p270
      $region26: #{tpu_custom_call.1} parent=5 // pred_check_branch
        %273 = sbr.rel (%p271) target = $region28
      $region27: #{tpu_custom_call.1} parent=5 // pred_region
        // Predicated region
        $region29: #{tpu_custom_call.1} parent=27 // pred_check
          %p274 = pneg %p121
        $region30: #{tpu_custom_call.1} parent=27 // pred_check_branch
          %276 = sbr.rel (%p274) target = $region32
        $region31: #{tpu_custom_call.1} parent=27 // pred_region
          %s277 = sand.u32 %s21, 1
          %s278 = scalar_lea.sflag [#allocation6], %s277
          %s279 = sand.u32 %s111, 1
          %s280 = smul.addr %s279, 128
          %s281 = scalar_lea.vmem [#allocation5], %s280
          %s283 = ssub.s32 2048, 2048
          %284 = vsyncadd %s278, %s283
          %s285 = smul.addr %s29, 32
          %s286 = smul.addr %s285, 64
          %s287 = scalar_lea.hbm %s3, %s286
          %s288 = sshll.u32 %s281, 4
          %s289 = int_to_ptr.vmem [resolvable:$true] %s288
          %294 = dma.hbm_to_vmem [thread:$0]  %s287, 2048, %s289, %s278, 128, 128, 8
        $region32: #{tpu_custom_call.1} parent=27 // pred_fallthru
          _
        // Predicated region
        $region33: #{tpu_custom_call.1} parent=27 // pred_check
          %p295 = pneg %p147
        $region34: #{tpu_custom_call.1} parent=27 // pred_check_branch
          %297 = sbr.rel (%p295) target = $region36
        $region35: #{tpu_custom_call.1} parent=27 // pred_region
          %s298 = sand.u32 %s21, 1
          %s299 = scalar_lea.sflag [#allocation6], %s298
          %s300 = sand.u32 %s137, 1
          %s301 = smul.addr %s300, 128
          %s302 = scalar_lea.vmem [#allocation7], %s301
          %s304 = ssub.s32 2048, 2048
          %305 = vsyncadd %s299, %s304
          %s306 = smul.addr %s29, 32
          %s307 = smul.addr %s306, 64
          %s308 = scalar_lea.hbm %s4, %s307
          %s309 = sshll.u32 %s302, 4
          %s310 = int_to_ptr.vmem [resolvable:$true] %s309
          %315 = dma.hbm_to_vmem [thread:$0]  %s308, 2048, %s310, %s299, 128, 128, 8
        $region36: #{tpu_custom_call.1} parent=27 // pred_fallthru
          _
        // Predicated region
        $region37: #{tpu_custom_call.1} parent=27 // pred_check
          %p316 = pneg %p173
        $region38: #{tpu_custom_call.1} parent=27 // pred_check_branch
          %318 = sbr.rel (%p316) target = $region40
        $region39: #{tpu_custom_call.1} parent=27 // pred_region
          %s319 = sand.u32 %s163, 1
          %s320 = scalar_lea.sflag [#allocation9], %s319
          %s321 = sand.u32 %s163, 1
          %s322 = smul.addr %s321, 128
          %s323 = scalar_lea.vmem [#allocation8], %s322
          %s325 = ssub.s32 2048, 2048
          %326 = vsyncadd %s320, %s325
          %s327 = smul.addr %s29, 32
          %s328 = smul.addr %s327, 64
          %s329 = scalar_lea.hbm %s5, %s328
          %s330 = sshll.u32 %s323, 4
          %s331 = int_to_ptr.vmem [resolvable:$true] %s330
          %336 = dma.hbm_to_vmem [thread:$0]  %s329, 2048, %s331, %s320, 64, 64, 4
        $region40: #{tpu_custom_call.1} parent=27 // pred_fallthru
          _
        // Predicated region
        $region41: #{tpu_custom_call.1} parent=27 // pred_check
          %p337 = pneg %p199
        $region42: #{tpu_custom_call.1} parent=27 // pred_check_branch
          %339 = sbr.rel (%p337) target = $region44
        $region43: #{tpu_custom_call.1} parent=27 // pred_region
          %p340 = scmp.lt.s32.totalorder %s29, 1
          %s341 = scalar_select %p340, %s29, 1
          %s342 = smul.addr %s341, 2
          %s343 = smul.addr %s342, 8
          %s344 = scalar_lea.vmem %s6, %s343
        $region44: #{tpu_custom_call.1} parent=27 // pred_fallthru
          _
      $region28: #{tpu_custom_call.1} parent=5 // pred_fallthru
        _
      %p345 = scmp.le.s32.totalorder 1, %s21
      %p346 = scmp.lt.s32.totalorder %s21, 3
      %p347 = pnand %p345, %p346
      %p348 = pneg %p347
      // Predicated region
      $region45: #{tpu_custom_call.1} parent=5 // pred_check
        _
      $region46: #{tpu_custom_call.1} parent=5 // pred_check_branch
        %350 = sbr.rel (%p347) target = $region48
      $region47: #{tpu_custom_call.1} parent=5 // pred_region
        %s351 = ssub.s32 %s21, 1
        // Predicated region
        $region49: #{tpu_custom_call.1} parent=47 // pred_check
          %p352 = pneg %p80
        $region50: #{tpu_custom_call.1} parent=47 // pred_check_branch
          %354 = sbr.rel (%p352) target = $region52
        $region51: #{tpu_custom_call.1} parent=47 // pred_region
          %355 = dma.done [#allocation3], 4096
        $region52: #{tpu_custom_call.1} parent=47 // pred_fallthru
          _
        %s356 = sand.u32 %s26, 1
        %s357 = scalar_lea.sflag [#allocation6], %s356
        %s358 = sand.u32 %s114, 1
        %s359 = smul.addr %s358, 128
        %s360 = scalar_lea.vmem [#allocation5], %s359
        // Predicated region
        $region53: #{tpu_custom_call.1} parent=47 // pred_check
          %p361 = pneg %p127
        $region54: #{tpu_custom_call.1} parent=47 // pred_check_branch
          %363 = sbr.rel (%p361) target = $region56
        $region55: #{tpu_custom_call.1} parent=47 // pred_region
          %364 = dma.done %s357, 2048
        $region56: #{tpu_custom_call.1} parent=47 // pred_fallthru
          _
        %s365 = sand.u32 %s26, 1
        %s366 = scalar_lea.sflag [#allocation6], %s365
        %s367 = sand.u32 %s140, 1
        %s368 = smul.addr %s367, 128
        %s369 = scalar_lea.vmem [#allocation7], %s368
        // Predicated region
        $region57: #{tpu_custom_call.1} parent=47 // pred_check
          %p370 = pneg %p153
        $region58: #{tpu_custom_call.1} parent=47 // pred_check_branch
          %372 = sbr.rel (%p370) target = $region60
        $region59: #{tpu_custom_call.1} parent=47 // pred_region
          %373 = dma.done %s366, 2048
        $region60: #{tpu_custom_call.1} parent=47 // pred_fallthru
          _
        %s374 = sand.u32 %s166, 1
        %s375 = scalar_lea.sflag [#allocation9], %s374
        %s376 = sand.u32 %s166, 1
        %s377 = smul.addr %s376, 128
        %s378 = scalar_lea.vmem [#allocation8], %s377
        // Predicated region
        $region61: #{tpu_custom_call.1} parent=47 // pred_check
          %p379 = pneg %p179
        $region62: #{tpu_custom_call.1} parent=47 // pred_check_branch
          %381 = sbr.rel (%p379) target = $region64
        $region63: #{tpu_custom_call.1} parent=47 // pred_region
          %382 = dma.done %s375, 2048
        $region64: #{tpu_custom_call.1} parent=47 // pred_fallthru
          _
        %p383 = scmp.lt.s32.totalorder %s30, 0
        %s384 = scalar_select %p383, %s30, 0
        %s385 = smul.addr %s384, 4
        %s386 = smul.addr %s385, 8
        %s387 = scalar_lea.vmem %s0, %s386
        %p388 = pneg %p59
        %p389 = pneg %p56
        %p390 = pneg %p80
        %p391 = pneg %p77
        %p392 = pneg %p101
        %p393 = pneg %p98
        %s394 = sand.u32 %s26, 1
        %s395 = scalar_lea.sflag [#allocation6], %s394
        %s396 = sand.u32 %s114, 1
        %s397 = smul.addr %s396, 128
        %s398 = scalar_lea.vmem [#allocation5], %s397
        %p399 = pneg %p127
        %p400 = pneg %p124
        %s401 = sand.u32 %s26, 1
        %s402 = scalar_lea.sflag [#allocation6], %s401
        %s403 = sand.u32 %s140, 1
        %s404 = smul.addr %s403, 128
        %s405 = scalar_lea.vmem [#allocation7], %s404
        %p406 = pneg %p153
        %p407 = pneg %p150
        %s408 = sand.u32 %s166, 1
        %s409 = scalar_lea.sflag [#allocation9], %s408
        %s410 = sand.u32 %s166, 1
        %s411 = smul.addr %s410, 128
        %s412 = scalar_lea.vmem [#allocation8], %s411
        %p413 = pneg %p179
        %p414 = pneg %p176
        %p415 = scmp.lt.s32.totalorder %s31, 1
        %s416 = scalar_select %p415, %s31, 1
        %s417 = smul.addr %s416, 2
        %s418 = smul.addr %s417, 8
        %s419 = scalar_lea.vmem %s6, %s418
        %p420 = pneg %p205
        %p421 = pneg %p202
        %p422 = pneg %p231
        %p423 = pneg %p228
        %p424 = scmp.lt.s32.totalorder %s30, 0
        %s425 = scalar_select %p424, %s30, 0
        %s426 = smul.addr %s425, 4
        %s427 = smul.addr %s426, 8
        %s428 = scalar_lea.vmem %s0, %s427
        %p429 = scmp.lt.s32.totalorder %s31, 1
        %s430 = scalar_select %p429, %s31, 1
        %s431 = smul.addr %s430, 2
        %s432 = smul.addr %s431, 8
        %s433 = scalar_lea.vmem %s6, %s432
        %p435 = scmp.eq.s32.totalorder %s31, 0
        // Predicated region
        $region65: #{tpu_custom_call.1} parent=47 // pred_check
          %p436 = pneg %p435
        $region66: #{tpu_custom_call.1} parent=47 // pred_check_branch
          %438 = sbr.rel (%p436) target = $region68
        $region67: #{tpu_custom_call.1} parent=47 // pred_region
          %v439 = vld [vmem:[%s428] sm:$0xff]
          %v440 = vld [vmem:[%s428 + $0x8] sm:$0xff]
          %v441 = vld [vmem:[%s428 + $0x10] sm:$0xff]
          %v442 = vld [vmem:[%s428 + $0x18] sm:$0xff]
          %v443 = vld [vmem:[#allocation2] sm:$0xf]
          %v444 = vld [vmem:[#allocation2 + $0x4] sm:$0xf]
          %v445 = vld [vmem:[#allocation2 + $0x8] sm:$0xf]
          %v446 = vld [vmem:[#allocation2 + $0xc] sm:$0xf]
          %v447 = vld [vmem:[#allocation2 + $0x10] sm:$0xf]
          %v448 = vld [vmem:[#allocation2 + $0x14] sm:$0xf]
          %v449 = vld [vmem:[#allocation2 + $0x18] sm:$0xf]
          %v450 = vld [vmem:[#allocation2 + $0x1c] sm:$0xf]
          %v451 = vld [vmem:[#allocation2 + $0x20] sm:$0xf]
          %v452 = vld [vmem:[#allocation2 + $0x24] sm:$0xf]
          %v453 = vld [vmem:[#allocation2 + $0x28] sm:$0xf]
          %v454 = vld [vmem:[#allocation2 + $0x2c] sm:$0xf]
          %v455 = vld [vmem:[#allocation2 + $0x30] sm:$0xf]
          %v456 = vld [vmem:[#allocation2 + $0x34] sm:$0xf]
          %v457 = vld [vmem:[#allocation2 + $0x38] sm:$0xf]
          %v458 = vld [vmem:[#allocation2 + $0x3c] sm:$0xf]
          %v459 = vld [vmem:[#allocation2 + $0x40] sm:$0xf]
          %v460 = vld [vmem:[#allocation2 + $0x44] sm:$0xf]
          %v461 = vld [vmem:[#allocation2 + $0x48] sm:$0xf]
          %v462 = vld [vmem:[#allocation2 + $0x4c] sm:$0xf]
          %v463 = vld [vmem:[#allocation2 + $0x50] sm:$0xf]
          %v464 = vld [vmem:[#allocation2 + $0x54] sm:$0xf]
          %v465 = vld [vmem:[#allocation2 + $0x58] sm:$0xf]
          %v466 = vld [vmem:[#allocation2 + $0x5c] sm:$0xf]
          %v467 = vld [vmem:[#allocation2 + $0x60] sm:$0xf]
          %v468 = vld [vmem:[#allocation2 + $0x64] sm:$0xf]
          %v469 = vld [vmem:[#allocation2 + $0x68] sm:$0xf]
          %v470 = vld [vmem:[#allocation2 + $0x6c] sm:$0xf]
          %v471 = vld [vmem:[#allocation2 + $0x70] sm:$0xf]
          %v472 = vld [vmem:[#allocation2 + $0x74] sm:$0xf]
          %v473 = vld [vmem:[#allocation2 + $0x78] sm:$0xf]
          %v474 = vld [vmem:[#allocation2 + $0x7c] sm:$0xf]
          %v475 = vld [vmem:[#allocation2 + $0x80] sm:$0xf]
          %v476 = vld [vmem:[#allocation2 + $0x84] sm:$0xf]
          %v477 = vld [vmem:[#allocation2 + $0x88] sm:$0xf]
          %v478 = vld [vmem:[#allocation2 + $0x8c] sm:$0xf]
          %v479 = vld [vmem:[#allocation2 + $0x90] sm:$0xf]
          %v480 = vld [vmem:[#allocation2 + $0x94] sm:$0xf]
          %v481 = vld [vmem:[#allocation2 + $0x98] sm:$0xf]
          %v482 = vld [vmem:[#allocation2 + $0x9c] sm:$0xf]
          %v483 = vld [vmem:[#allocation2 + $0xa0] sm:$0xf]
          %v484 = vld [vmem:[#allocation2 + $0xa4] sm:$0xf]
          %v485 = vld [vmem:[#allocation2 + $0xa8] sm:$0xf]
          %v486 = vld [vmem:[#allocation2 + $0xac] sm:$0xf]
          %v487 = vld [vmem:[#allocation2 + $0xb0] sm:$0xf]
          %v488 = vld [vmem:[#allocation2 + $0xb4] sm:$0xf]
          %v489 = vld [vmem:[#allocation2 + $0xb8] sm:$0xf]
          %v490 = vld [vmem:[#allocation2 + $0xbc] sm:$0xf]
          %v491 = vld [vmem:[#allocation2 + $0xc0] sm:$0xf]
          %v492 = vld [vmem:[#allocation2 + $0xc4] sm:$0xf]
          %v493 = vld [vmem:[#allocation2 + $0xc8] sm:$0xf]
          %v494 = vld [vmem:[#allocation2 + $0xcc] sm:$0xf]
          %v495 = vld [vmem:[#allocation2 + $0xd0] sm:$0xf]
          %v496 = vld [vmem:[#allocation2 + $0xd4] sm:$0xf]
          %v497 = vld [vmem:[#allocation2 + $0xd8] sm:$0xf]
          %v498 = vld [vmem:[#allocation2 + $0xdc] sm:$0xf]
          %v499 = vld [vmem:[#allocation2 + $0xe0] sm:$0xf]
          %v500 = vld [vmem:[#allocation2 + $0xe4] sm:$0xf]
          %v501 = vld [vmem:[#allocation2 + $0xe8] sm:$0xf]
          %v502 = vld [vmem:[#allocation2 + $0xec] sm:$0xf]
          %v503 = vld [vmem:[#allocation2 + $0xf0] sm:$0xf]
          %v504 = vld [vmem:[#allocation2 + $0xf4] sm:$0xf]
          %v505 = vld [vmem:[#allocation2 + $0xf8] sm:$0xf]
          %v506 = vld [vmem:[#allocation2 + $0xfc] sm:$0xf]
          %v507 = vpack.c.bf16 %v439, %v439
          %v508 = vpack.c.bf16 %v440, %v440
          %v509 = vpack.c.bf16 %v441, %v441
          %v510 = vpack.c.bf16 %v442, %v442
          %v511 = vld [vmem:[%s2] sm:$0x1]
          %v513 = vlaneseq
          %v514 = vshrl.u32 %v513, 7
          %v515 = vsub.s32 0, %v514
          %v516 = vrot.slane %v511, %v515
          %v582 = vunpack.c.l.b16 %v443
          %v583 = vunpack.c.l.b16 %v444
          %v584 = vunpack.c.l.b16 %v445
          %v585 = vunpack.c.l.b16 %v446
          %v586 = vunpack.c.l.b16 %v447
          %v587 = vunpack.c.l.b16 %v448
          %v588 = vunpack.c.l.b16 %v449
          %v589 = vunpack.c.l.b16 %v450
          %v590 = vunpack.c.l.b16 %v451
          %v591 = vunpack.c.l.b16 %v452
          %v592 = vunpack.c.l.b16 %v453
          %v593 = vunpack.c.l.b16 %v454
          %v594 = vunpack.c.l.b16 %v455
          %v595 = vunpack.c.l.b16 %v456
          %v596 = vunpack.c.l.b16 %v457
          %v597 = vunpack.c.l.b16 %v458
          %v598 = vunpack.c.l.b16 %v459
          %v599 = vunpack.c.l.b16 %v460
          %v600 = vunpack.c.l.b16 %v461
          %v601 = vunpack.c.l.b16 %v462
          %v602 = vunpack.c.l.b16 %v463
          %v603 = vunpack.c.l.b16 %v464
          %v604 = vunpack.c.l.b16 %v465
          %v605 = vunpack.c.l.b16 %v466
          %v606 = vunpack.c.l.b16 %v467
          %v607 = vunpack.c.l.b16 %v468
          %v608 = vunpack.c.l.b16 %v469
          %v609 = vunpack.c.l.b16 %v470
          %v610 = vunpack.c.l.b16 %v471
          %v611 = vunpack.c.l.b16 %v472
          %v612 = vunpack.c.l.b16 %v473
          %v613 = vunpack.c.l.b16 %v474
          %v614 = vunpack.c.l.b16 %v475
          %v615 = vunpack.c.l.b16 %v476
          %v616 = vunpack.c.l.b16 %v477
          %v617 = vunpack.c.l.b16 %v478
          %v618 = vunpack.c.l.b16 %v479
          %v619 = vunpack.c.l.b16 %v480
          %v620 = vunpack.c.l.b16 %v481
          %v621 = vunpack.c.l.b16 %v482
          %v622 = vunpack.c.l.b16 %v483
          %v623 = vunpack.c.l.b16 %v484
          %v624 = vunpack.c.l.b16 %v485
          %v625 = vunpack.c.l.b16 %v486
          %v626 = vunpack.c.l.b16 %v487
          %v627 = vunpack.c.l.b16 %v488
          %v628 = vunpack.c.l.b16 %v489
          %v629 = vunpack.c.l.b16 %v490
          %v630 = vunpack.c.l.b16 %v491
          %v631 = vunpack.c.l.b16 %v492
          %v632 = vunpack.c.l.b16 %v493
          %v633 = vunpack.c.l.b16 %v494
          %v634 = vunpack.c.l.b16 %v495
          %v635 = vunpack.c.l.b16 %v496
          %v636 = vunpack.c.l.b16 %v497
          %v637 = vunpack.c.l.b16 %v498
          %v638 = vunpack.c.l.b16 %v499
          %v639 = vunpack.c.l.b16 %v500
          %v640 = vunpack.c.l.b16 %v501
          %v641 = vunpack.c.l.b16 %v502
          %v642 = vunpack.c.l.b16 %v503
          %v643 = vunpack.c.l.b16 %v504
          %v644 = vunpack.c.l.b16 %v505
          %v645 = vunpack.c.l.b16 %v506
          %v646 = vpack.c.b16 %v583, %v582
          %v647 = vpack.c.b16 %v585, %v584
          %v648 = vpack.c.b16 %v587, %v586
          %v649 = vpack.c.b16 %v589, %v588
          %v650 = vpack.c.b16 %v591, %v590
          %v651 = vpack.c.b16 %v593, %v592
          %v652 = vpack.c.b16 %v595, %v594
          %v653 = vpack.c.b16 %v597, %v596
          %v654 = vpack.c.b16 %v599, %v598
          %v655 = vpack.c.b16 %v601, %v600
          %v656 = vpack.c.b16 %v603, %v602
          %v657 = vpack.c.b16 %v605, %v604
          %v658 = vpack.c.b16 %v607, %v606
          %v659 = vpack.c.b16 %v609, %v608
          %v660 = vpack.c.b16 %v611, %v610
          %v661 = vpack.c.b16 %v613, %v612
          %v662 = vpack.c.b16 %v615, %v614
          %v663 = vpack.c.b16 %v617, %v616
          %v664 = vpack.c.b16 %v619, %v618
          %v665 = vpack.c.b16 %v621, %v620
          %v666 = vpack.c.b16 %v623, %v622
          %v667 = vpack.c.b16 %v625, %v624
          %v668 = vpack.c.b16 %v627, %v626
          %v669 = vpack.c.b16 %v629, %v628
          %v670 = vpack.c.b16 %v631, %v630
          %v671 = vpack.c.b16 %v633, %v632
          %v672 = vpack.c.b16 %v635, %v634
          %v673 = vpack.c.b16 %v637, %v636
          %v674 = vpack.c.b16 %v639, %v638
          %v675 = vpack.c.b16 %v641, %v640
          %v676 = vpack.c.b16 %v643, %v642
          %v677 = vpack.c.b16 %v645, %v644
          %710 = vmatprep.subr.bf16.mxu0 0
          %711 = vmatpush1.bf16.msra.mxu0 %v646
          %712 = vmatprep.subr.bf16.mxu0 0
          %713 = vmatpush1.bf16.msra.mxu0 %v647
          %714 = vmatprep.subr.bf16.mxu0 0
          %715 = vmatpush1.bf16.msra.mxu0 %v648
          %716 = vmatprep.subr.bf16.mxu0 0
          %717 = vmatpush1.bf16.msra.mxu0 %v649
          %718 = vmatprep.subr.bf16.mxu0 0
          %719 = vmatpush1.bf16.msra.mxu0 %v650
          %720 = vmatprep.subr.bf16.mxu0 0
          %721 = vmatpush1.bf16.msra.mxu0 %v651
          %722 = vmatprep.subr.bf16.mxu0 0
          %723 = vmatpush1.bf16.msra.mxu0 %v652
          %724 = vmatprep.subr.bf16.mxu0 0
          %725 = vmatpush1.bf16.msra.mxu0 %v653
          %726 = vmatprep.subr.bf16.mxu0 0
          %727 = vmatpush1.bf16.msra.mxu0 %v654
          %728 = vmatprep.subr.bf16.mxu0 0
          %729 = vmatpush1.bf16.msra.mxu0 %v655
          %730 = vmatprep.subr.bf16.mxu0 0
          %731 = vmatpush1.bf16.msra.mxu0 %v656
          %732 = vmatprep.subr.bf16.mxu0 0
          %733 = vmatpush1.bf16.msra.mxu0 %v657
          %734 = vmatprep.subr.bf16.mxu0 0
          %735 = vmatpush1.bf16.msra.mxu0 %v658
          %736 = vmatprep.subr.bf16.mxu0 0
          %737 = vmatpush1.bf16.msra.mxu0 %v659
          %738 = vmatprep.subr.bf16.mxu0 0
          %739 = vmatpush1.bf16.msra.mxu0 %v660
          %740 = vmatprep.subr.bf16.mxu0 0
          %741 = vmatpush1.bf16.msra.mxu0 %v661
          %742 = vmatprep.mubr.bf16.mxu0 %v508
          %743 = vmatmul.mubr.bf16.gmra.mrb[0].mxu0 %v507
          %v744 = vpop.f32.mrb[0].mxu0
          %v745 = vadd.f32 %v516, %v744
          %v746 = vpop.f32.mrb[0].mxu0
          %v747 = vpop.f32.mrb[0].mxu0
          %v748 = vpop.f32.mrb[0].mxu0
          %749 = vdwg.mxu0
          %750 = vmatprep.subr.bf16.mxu0 0
          %751 = vmatpush1.bf16.msra.mxu0 %v662
          %752 = vmatprep.subr.bf16.mxu0 0
          %753 = vmatpush1.bf16.msra.mxu0 %v663
          %754 = vmatprep.subr.bf16.mxu0 0
          %755 = vmatpush1.bf16.msra.mxu0 %v664
          %756 = vmatprep.subr.bf16.mxu0 0
          %757 = vmatpush1.bf16.msra.mxu0 %v665
          %758 = vmatprep.subr.bf16.mxu0 0
          %759 = vmatpush1.bf16.msra.mxu0 %v666
          %760 = vmatprep.subr.bf16.mxu0 0
          %761 = vmatpush1.bf16.msra.mxu0 %v667
          %762 = vmatprep.subr.bf16.mxu0 0
          %763 = vmatpush1.bf16.msra.mxu0 %v668
          %764 = vmatprep.subr.bf16.mxu0 0
          %765 = vmatpush1.bf16.msra.mxu0 %v669
          %766 = vmatprep.subr.bf16.mxu0 0
          %767 = vmatpush1.bf16.msra.mxu0 %v670
          %768 = vmatprep.subr.bf16.mxu0 0
          %769 = vmatpush1.bf16.msra.mxu0 %v671
          %770 = vmatprep.subr.bf16.mxu0 0
          %771 = vmatpush1.bf16.msra.mxu0 %v672
          %772 = vmatprep.subr.bf16.mxu0 0
          %773 = vmatpush1.bf16.msra.mxu0 %v673
          %774 = vmatprep.subr.bf16.mxu0 0
          %775 = vmatpush1.bf16.msra.mxu0 %v674
          %776 = vmatprep.subr.bf16.mxu0 0
          %777 = vmatpush1.bf16.msra.mxu0 %v675
          %778 = vmatprep.subr.bf16.mxu0 0
          %779 = vmatpush1.bf16.msra.mxu0 %v676
          %780 = vmatprep.subr.bf16.mxu0 0
          %781 = vmatpush1.bf16.msra.mxu0 %v677
          %782 = vmatprep.mubr.bf16.mxu0 %v510
          %783 = vmatmul.mubr.bf16.gmra.mrb[0].mxu0 %v509
          %v784 = vpop.f32.mrb[0].mxu0
          %v785 = vadd.f32 %v745, %v784
          %v786 = vpop.f32.mrb[0].mxu0
          %v787 = vpop.f32.mrb[0].mxu0
          %v788 = vpop.f32.mrb[0].mxu0
          %789 = vdwg.mxu0
          %790 = vst [vmem:[#allocation10] sm:$0xff] %v785
        $region68: #{tpu_custom_call.1} parent=47 // pred_fallthru
          _
        %v791 = vld [vmem:[#allocation10] sm:$0xff]
        %v792 = vld [vmem:[%s433] sm:$0x7f]
        %v793 = vld [vmem:[%s433 + $0x8] sm:$0x7f]
        %v794 = vld [vmem:[%s360] sm:$0xff]
        %v795 = vld [vmem:[%s360 + $0x8] sm:$0xff]
        %v796 = vld [vmem:[%s360 + $0x10] sm:$0xff]
        %v797 = vld [vmem:[%s360 + $0x18] sm:$0xff]
        %v798 = vld [vmem:[%s360 + $0x20] sm:$0xff]
        %v799 = vld [vmem:[%s360 + $0x28] sm:$0xff]
        %v800 = vld [vmem:[%s360 + $0x30] sm:$0xff]
        %v801 = vld [vmem:[%s360 + $0x38] sm:$0xff]
        %v802 = vld [vmem:[%s360 + $0x40] sm:$0xff]
        %v803 = vld [vmem:[%s360 + $0x48] sm:$0xff]
        %v804 = vld [vmem:[%s360 + $0x50] sm:$0xff]
        %v805 = vld [vmem:[%s360 + $0x58] sm:$0xff]
        %v806 = vld [vmem:[%s360 + $0x60] sm:$0xff]
        %v807 = vld [vmem:[%s360 + $0x68] sm:$0xff]
        %v808 = vld [vmem:[%s360 + $0x70] sm:$0xff]
        %v809 = vld [vmem:[%s360 + $0x78] sm:$0xff]
        %v810 = vpack.c.bf16 %v791, %v791
        %v811 = vlaneseq
        %v812 = vshrl.u32 %v811, 7
        %v813 = vsub.s32 0, %v812
        %v814 = vrot.slane %v792, %v813
        %v815 = vlaneseq
        %v816 = vshrl.u32 %v815, 7
        %v817 = vsub.s32 0, %v816
        %v818 = vrot.slane %v793, %v817
        %v835 = vunpack.c.l.b16 %v794
        %v836 = vunpack.c.h.b16 %v794
        %v837 = vunpack.c.l.b16 %v795
        %v838 = vunpack.c.h.b16 %v795
        %v839 = vunpack.c.l.b16 %v796
        %v840 = vunpack.c.h.b16 %v796
        %v841 = vunpack.c.l.b16 %v797
        %v842 = vunpack.c.h.b16 %v797
        %v843 = vunpack.c.l.b16 %v798
        %v844 = vunpack.c.h.b16 %v798
        %v845 = vunpack.c.l.b16 %v799
        %v846 = vunpack.c.h.b16 %v799
        %v847 = vunpack.c.l.b16 %v800
        %v848 = vunpack.c.h.b16 %v800
        %v849 = vunpack.c.l.b16 %v801
        %v850 = vunpack.c.h.b16 %v801
        %v851 = vunpack.c.l.b16 %v802
        %v852 = vunpack.c.h.b16 %v802
        %v853 = vunpack.c.l.b16 %v803
        %v854 = vunpack.c.h.b16 %v803
        %v855 = vunpack.c.l.b16 %v804
        %v856 = vunpack.c.h.b16 %v804
        %v857 = vunpack.c.l.b16 %v805
        %v858 = vunpack.c.h.b16 %v805
        %v859 = vunpack.c.l.b16 %v806
        %v860 = vunpack.c.h.b16 %v806
        %v861 = vunpack.c.l.b16 %v807
        %v862 = vunpack.c.h.b16 %v807
        %v863 = vunpack.c.l.b16 %v808
        %v864 = vunpack.c.h.b16 %v808
        %v865 = vunpack.c.l.b16 %v809
        %v866 = vunpack.c.h.b16 %v809
        %v867 = vpack.c.b16 %v837, %v835
        %v868 = vpack.c.b16 %v838, %v836
        %v869 = vpack.c.b16 %v841, %v839
        %v870 = vpack.c.b16 %v842, %v840
        %v871 = vpack.c.b16 %v845, %v843
        %v872 = vpack.c.b16 %v846, %v844
        %v873 = vpack.c.b16 %v849, %v847
        %v874 = vpack.c.b16 %v850, %v848
        %v875 = vpack.c.b16 %v853, %v851
        %v876 = vpack.c.b16 %v854, %v852
        %v877 = vpack.c.b16 %v857, %v855
        %v878 = vpack.c.b16 %v858, %v856
        %v879 = vpack.c.b16 %v861, %v859
        %v880 = vpack.c.b16 %v862, %v860
        %v881 = vpack.c.b16 %v865, %v863
        %v882 = vpack.c.b16 %v866, %v864
        %899 = vmatprep.subr.bf16.mxu0 %v868
        %900 = vmatpush1.bf16.msra.mxu0 %v867
        %901 = vmatprep.subr.bf16.mxu0 %v870
        %902 = vmatpush1.bf16.msra.mxu0 %v869
        %903 = vmatprep.subr.bf16.mxu0 %v872
        %904 = vmatpush1.bf16.msra.mxu0 %v871
        %905 = vmatprep.subr.bf16.mxu0 %v874
        %906 = vmatpush1.bf16.msra.mxu0 %v873
        %907 = vmatprep.subr.bf16.mxu0 %v876
        %908 = vmatpush1.bf16.msra.mxu0 %v875
        %909 = vmatprep.subr.bf16.mxu0 %v878
        %910 = vmatpush1.bf16.msra.mxu0 %v877
        %911 = vmatprep.subr.bf16.mxu0 %v880
        %912 = vmatpush1.bf16.msra.mxu0 %v879
        %913 = vmatprep.subr.bf16.mxu0 %v882
        %914 = vmatpush1.bf16.msra.mxu0 %v881
        %915 = vmatprep.subr.bf16.mxu0 0
        %916 = vmatpush1.bf16.msra.mxu0 0
        %917 = vmatprep.subr.bf16.mxu0 0
        %918 = vmatpush1.bf16.msra.mxu0 0
        %919 = vmatprep.subr.bf16.mxu0 0
        %920 = vmatpush1.bf16.msra.mxu0 0
        %921 = vmatprep.subr.bf16.mxu0 0
        %922 = vmatpush1.bf16.msra.mxu0 0
        %923 = vmatprep.subr.bf16.mxu0 0
        %924 = vmatpush1.bf16.msra.mxu0 0
        %925 = vmatprep.subr.bf16.mxu0 0
        %926 = vmatpush1.bf16.msra.mxu0 0
        %927 = vmatprep.subr.bf16.mxu0 0
        %928 = vmatpush1.bf16.msra.mxu0 0
        %929 = vmatprep.subr.bf16.mxu0 0
        %930 = vmatpush1.bf16.msra.mxu0 0
        %931 = vmatprep.mubr.bf16.mxu0 0
        %932 = vmatmul.mubr.bf16.gmra.mrb[0].mxu0 %v810
        %v933 = vpop.f32.mrb[0].mxu0
        %v934 = vadd.f32 %v814, %v933
        %v935 = vpop.f32.mrb[0].mxu0
        %v936 = vadd.f32 %v818, %v935
        %v937 = vpop.f32.mrb[0].mxu0
        %v938 = vpop.f32.mrb[0].mxu0
        %939 = vdwg.mxu0
        %v940 = vxor.u32 %v934, 2147483648
        %v941 = vmul.f32 %v940, 1.442695
        %v942 = vpow.pop %v941
        %v943 = vadd.f32 %v942, 1.0
        %v944 = vrcp.pop %v943
        %v945 = vmul.f32 1.0, %v944
        %v946 = vmul.f32 %v945, %v936
        %v947 = vadd.f32 %v791, %v946
        %948 = vadd.xlane.f32.xlu0 %v947
        %v949 = vpop.xlane.xlu0 %948
        %v950 = vrcp.pop 128.0
        %v951 = vmul.f32 %v949, %v950
        %v952 = vsub.f32 %v947, %v951
        %v953 = vmul.f32 %v952, %v952
        %954 = vadd.xlane.f32.xlu0 %v953
        %v955 = vpop.xlane.xlu0 %954
        %v956 = vmul.f32 %v955, %v950
        %v957 = vadd.f32 %v956, 1e-05
        %v958 = vrsqrt.pop %v957
        %v959 = vmul.f32 %v952, %v958
        %v960 = vlaneseq
        %v961 = vshrl.u32 %v960, 7
        %v962 = vsub.s32 3, %v961
        %v963 = vrot.slane %v792, %v962
        %v964 = vmul.f32 %v959, %v963
        %v965 = vlaneseq
        %v966 = vshrl.u32 %v965, 7
        %v967 = vsub.s32 4, %v966
        %v968 = vrot.slane %v792, %v967
        %v969 = vadd.f32 %v964, %v968
        %v970 = vld [vmem:[%s369] sm:$0xff]
        %v971 = vld [vmem:[%s369 + $0x8] sm:$0xff]
        %v972 = vld [vmem:[%s369 + $0x10] sm:$0xff]
        %v973 = vld [vmem:[%s369 + $0x18] sm:$0xff]
        %v974 = vld [vmem:[%s369 + $0x20] sm:$0xff]
        %v975 = vld [vmem:[%s369 + $0x28] sm:$0xff]
        %v976 = vld [vmem:[%s369 + $0x30] sm:$0xff]
        %v977 = vld [vmem:[%s369 + $0x38] sm:$0xff]
        %v978 = vld [vmem:[%s369 + $0x40] sm:$0xff]
        %v979 = vld [vmem:[%s369 + $0x48] sm:$0xff]
        %v980 = vld [vmem:[%s369 + $0x50] sm:$0xff]
        %v981 = vld [vmem:[%s369 + $0x58] sm:$0xff]
        %v982 = vld [vmem:[%s369 + $0x60] sm:$0xff]
        %v983 = vld [vmem:[%s369 + $0x68] sm:$0xff]
        %v984 = vld [vmem:[%s369 + $0x70] sm:$0xff]
        %v985 = vld [vmem:[%s369 + $0x78] sm:$0xff]
        %v986 = vpack.c.bf16 %v969, %v969
        %v987 = vlaneseq
        %v988 = vshrl.u32 %v987, 7
        %v989 = vsub.s32 1, %v988
        %v990 = vrot.slane %v792, %v989
        %v991 = vlaneseq
        %v992 = vshrl.u32 %v991, 7
        %v993 = vsub.s32 1, %v992
        %v994 = vrot.slane %v793, %v993
        %v1011 = vunpack.c.l.b16 %v970
        %v1012 = vunpack.c.h.b16 %v970
        %v1013 = vunpack.c.l.b16 %v971
        %v1014 = vunpack.c.h.b16 %v971
        %v1015 = vunpack.c.l.b16 %v972
        %v1016 = vunpack.c.h.b16 %v972
        %v1017 = vunpack.c.l.b16 %v973
        %v1018 = vunpack.c.h.b16 %v973
        %v1019 = vunpack.c.l.b16 %v974
        %v1020 = vunpack.c.h.b16 %v974
        %v1021 = vunpack.c.l.b16 %v975
        %v1022 = vunpack.c.h.b16 %v975
        %v1023 = vunpack.c.l.b16 %v976
        %v1024 = vunpack.c.h.b16 %v976
        %v1025 = vunpack.c.l.b16 %v977
        %v1026 = vunpack.c.h.b16 %v977
        %v1027 = vunpack.c.l.b16 %v978
        %v1028 = vunpack.c.h.b16 %v978
        %v1029 = vunpack.c.l.b16 %v979
        %v1030 = vunpack.c.h.b16 %v979
        %v1031 = vunpack.c.l.b16 %v980
        %v1032 = vunpack.c.h.b16 %v980
        %v1033 = vunpack.c.l.b16 %v981
        %v1034 = vunpack.c.h.b16 %v981
        %v1035 = vunpack.c.l.b16 %v982
        %v1036 = vunpack.c.h.b16 %v982
        %v1037 = vunpack.c.l.b16 %v983
        %v1038 = vunpack.c.h.b16 %v983
        %v1039 = vunpack.c.l.b16 %v984
        %v1040 = vunpack.c.h.b16 %v984
        %v1041 = vunpack.c.l.b16 %v985
        %v1042 = vunpack.c.h.b16 %v985
        %v1043 = vpack.c.b16 %v1013, %v1011
        %v1044 = vpack.c.b16 %v1014, %v1012
        %v1045 = vpack.c.b16 %v1017, %v1015
        %v1046 = vpack.c.b16 %v1018, %v1016
        %v1047 = vpack.c.b16 %v1021, %v1019
        %v1048 = vpack.c.b16 %v1022, %v1020
        %v1049 = vpack.c.b16 %v1025, %v1023
        %v1050 = vpack.c.b16 %v1026, %v1024
        %v1051 = vpack.c.b16 %v1029, %v1027
        %v1052 = vpack.c.b16 %v1030, %v1028
        %v1053 = vpack.c.b16 %v1033, %v1031
        %v1054 = vpack.c.b16 %v1034, %v1032
        %v1055 = vpack.c.b16 %v1037, %v1035
        %v1056 = vpack.c.b16 %v1038, %v1036
        %v1057 = vpack.c.b16 %v1041, %v1039
        %v1058 = vpack.c.b16 %v1042, %v1040
        %1075 = vmatprep.subr.bf16.mxu0 %v1044
        %1076 = vmatpush1.bf16.msra.mxu0 %v1043
        %1077 = vmatprep.subr.bf16.mxu0 %v1046
        %1078 = vmatpush1.bf16.msra.mxu0 %v1045
        %1079 = vmatprep.subr.bf16.mxu0 %v1048
        %1080 = vmatpush1.bf16.msra.mxu0 %v1047
        %1081 = vmatprep.subr.bf16.mxu0 %v1050
        %1082 = vmatpush1.bf16.msra.mxu0 %v1049
        %1083 = vmatprep.subr.bf16.mxu0 %v1052
        %1084 = vmatpush1.bf16.msra.mxu0 %v1051
        %1085 = vmatprep.subr.bf16.mxu0 %v1054
        %1086 = vmatpush1.bf16.msra.mxu0 %v1053
        %1087 = vmatprep.subr.bf16.mxu0 %v1056
        %1088 = vmatpush1.bf16.msra.mxu0 %v1055
        %1089 = vmatprep.subr.bf16.mxu0 %v1058
        %1090 = vmatpush1.bf16.msra.mxu0 %v1057
        %1091 = vmatprep.subr.bf16.mxu0 0
        %1092 = vmatpush1.bf16.msra.mxu0 0
        %1093 = vmatprep.subr.bf16.mxu0 0
        %1094 = vmatpush1.bf16.msra.mxu0 0
        %1095 = vmatprep.subr.bf16.mxu0 0
        %1096 = vmatpush1.bf16.msra.mxu0 0
        %1097 = vmatprep.subr.bf16.mxu0 0
        %1098 = vmatpush1.bf16.msra.mxu0 0
        %1099 = vmatprep.subr.bf16.mxu0 0
        %1100 = vmatpush1.bf16.msra.mxu0 0
        %1101 = vmatprep.subr.bf16.mxu0 0
        %1102 = vmatpush1.bf16.msra.mxu0 0
        %1103 = vmatprep.subr.bf16.mxu0 0
        %1104 = vmatpush1.bf16.msra.mxu0 0
        %1105 = vmatprep.subr.bf16.mxu0 0
        %1106 = vmatpush1.bf16.msra.mxu0 0
        %1107 = vmatprep.mubr.bf16.mxu0 0
        %1108 = vmatmul.mubr.bf16.gmra.mrb[0].mxu0 %v986
        %v1109 = vpop.f32.mrb[0].mxu0
        %v1110 = vadd.f32 %v990, %v1109
        %v1111 = vpop.f32.mrb[0].mxu0
        %v1112 = vadd.f32 %v994, %v1111
        %v1113 = vpop.f32.mrb[0].mxu0
        %v1114 = vpop.f32.mrb[0].mxu0
        %1115 = vdwg.mxu0
        %v1116 = vmax.f32 %v1110, 0.0
        %v1117 = vmax.f32 %v1112, 0.0
        %v1118 = vld [vmem:[%s378] sm:$0xf]
        %v1119 = vld [vmem:[%s378 + $0x4] sm:$0xf]
        %v1120 = vld [vmem:[%s378 + $0x8] sm:$0xf]
        %v1121 = vld [vmem:[%s378 + $0xc] sm:$0xf]
        %v1122 = vld [vmem:[%s378 + $0x10] sm:$0xf]
        %v1123 = vld [vmem:[%s378 + $0x14] sm:$0xf]
        %v1124 = vld [vmem:[%s378 + $0x18] sm:$0xf]
        %v1125 = vld [vmem:[%s378 + $0x1c] sm:$0xf]
        %v1126 = vld [vmem:[%s378 + $0x20] sm:$0xf]
        %v1127 = vld [vmem:[%s378 + $0x24] sm:$0xf]
        %v1128 = vld [vmem:[%s378 + $0x28] sm:$0xf]
        %v1129 = vld [vmem:[%s378 + $0x2c] sm:$0xf]
        %v1130 = vld [vmem:[%s378 + $0x30] sm:$0xf]
        %v1131 = vld [vmem:[%s378 + $0x34] sm:$0xf]
        %v1132 = vld [vmem:[%s378 + $0x38] sm:$0xf]
        %v1133 = vld [vmem:[%s378 + $0x3c] sm:$0xf]
        %v1134 = vld [vmem:[%s378 + $0x40] sm:$0xf]
        %v1135 = vld [vmem:[%s378 + $0x44] sm:$0xf]
        %v1136 = vld [vmem:[%s378 + $0x48] sm:$0xf]
        %v1137 = vld [vmem:[%s378 + $0x4c] sm:$0xf]
        %v1138 = vld [vmem:[%s378 + $0x50] sm:$0xf]
        %v1139 = vld [vmem:[%s378 + $0x54] sm:$0xf]
        %v1140 = vld [vmem:[%s378 + $0x58] sm:$0xf]
        %v1141 = vld [vmem:[%s378 + $0x5c] sm:$0xf]
        %v1142 = vld [vmem:[%s378 + $0x60] sm:$0xf]
        %v1143 = vld [vmem:[%s378 + $0x64] sm:$0xf]
        %v1144 = vld [vmem:[%s378 + $0x68] sm:$0xf]
        %v1145 = vld [vmem:[%s378 + $0x6c] sm:$0xf]
        %v1146 = vld [vmem:[%s378 + $0x70] sm:$0xf]
        %v1147 = vld [vmem:[%s378 + $0x74] sm:$0xf]
        %v1148 = vld [vmem:[%s378 + $0x78] sm:$0xf]
        %v1149 = vld [vmem:[%s378 + $0x7c] sm:$0xf]
        %v1150 = vpack.c.bf16 %v1116, %v1116
        %v1151 = vpack.c.bf16 %v1117, %v1117
        %v1152 = vlaneseq
        %v1153 = vshrl.u32 %v1152, 7
        %v1154 = vsub.s32 2, %v1153
        %v1155 = vrot.slane %v792, %v1154
        %v1188 = vunpack.c.l.b16 %v1118
        %v1189 = vunpack.c.l.b16 %v1119
        %v1190 = vunpack.c.l.b16 %v1120
        %v1191 = vunpack.c.l.b16 %v1121
        %v1192 = vunpack.c.l.b16 %v1122
        %v1193 = vunpack.c.l.b16 %v1123
        %v1194 = vunpack.c.l.b16 %v1124
        %v1195 = vunpack.c.l.b16 %v1125
        %v1196 = vunpack.c.l.b16 %v1126
        %v1197 = vunpack.c.l.b16 %v1127
        %v1198 = vunpack.c.l.b16 %v1128
        %v1199 = vunpack.c.l.b16 %v1129
        %v1200 = vunpack.c.l.b16 %v1130
        %v1201 = vunpack.c.l.b16 %v1131
        %v1202 = vunpack.c.l.b16 %v1132
        %v1203 = vunpack.c.l.b16 %v1133
        %v1204 = vunpack.c.l.b16 %v1134
        %v1205 = vunpack.c.l.b16 %v1135
        %v1206 = vunpack.c.l.b16 %v1136
        %v1207 = vunpack.c.l.b16 %v1137
        %v1208 = vunpack.c.l.b16 %v1138
        %v1209 = vunpack.c.l.b16 %v1139
        %v1210 = vunpack.c.l.b16 %v1140
        %v1211 = vunpack.c.l.b16 %v1141
        %v1212 = vunpack.c.l.b16 %v1142
        %v1213 = vunpack.c.l.b16 %v1143
        %v1214 = vunpack.c.l.b16 %v1144
        %v1215 = vunpack.c.l.b16 %v1145
        %v1216 = vunpack.c.l.b16 %v1146
        %v1217 = vunpack.c.l.b16 %v1147
        %v1218 = vunpack.c.l.b16 %v1148
        %v1219 = vunpack.c.l.b16 %v1149
        %v1220 = vpack.c.b16 %v1189, %v1188
        %v1221 = vpack.c.b16 %v1191, %v1190
        %v1222 = vpack.c.b16 %v1193, %v1192
        %v1223 = vpack.c.b16 %v1195, %v1194
        %v1224 = vpack.c.b16 %v1197, %v1196
        %v1225 = vpack.c.b16 %v1199, %v1198
        %v1226 = vpack.c.b16 %v1201, %v1200
        %v1227 = vpack.c.b16 %v1203, %v1202
        %v1228 = vpack.c.b16 %v1205, %v1204
        %v1229 = vpack.c.b16 %v1207, %v1206
        %v1230 = vpack.c.b16 %v1209, %v1208
        %v1231 = vpack.c.b16 %v1211, %v1210
        %v1232 = vpack.c.b16 %v1213, %v1212
        %v1233 = vpack.c.b16 %v1215, %v1214
        %v1234 = vpack.c.b16 %v1217, %v1216
        %v1235 = vpack.c.b16 %v1219, %v1218
        %1252 = vmatprep.subr.bf16.mxu0 0
        %1253 = vmatpush1.bf16.msra.mxu0 %v1220
        %1254 = vmatprep.subr.bf16.mxu0 0
        %1255 = vmatpush1.bf16.msra.mxu0 %v1221
        %1256 = vmatprep.subr.bf16.mxu0 0
        %1257 = vmatpush1.bf16.msra.mxu0 %v1222
        %1258 = vmatprep.subr.bf16.mxu0 0
        %1259 = vmatpush1.bf16.msra.mxu0 %v1223
        %1260 = vmatprep.subr.bf16.mxu0 0
        %1261 = vmatpush1.bf16.msra.mxu0 %v1224
        %1262 = vmatprep.subr.bf16.mxu0 0
        %1263 = vmatpush1.bf16.msra.mxu0 %v1225
        %1264 = vmatprep.subr.bf16.mxu0 0
        %1265 = vmatpush1.bf16.msra.mxu0 %v1226
        %1266 = vmatprep.subr.bf16.mxu0 0
        %1267 = vmatpush1.bf16.msra.mxu0 %v1227
        %1268 = vmatprep.subr.bf16.mxu0 0
        %1269 = vmatpush1.bf16.msra.mxu0 %v1228
        %1270 = vmatprep.subr.bf16.mxu0 0
        %1271 = vmatpush1.bf16.msra.mxu0 %v1229
        %1272 = vmatprep.subr.bf16.mxu0 0
        %1273 = vmatpush1.bf16.msra.mxu0 %v1230
        %1274 = vmatprep.subr.bf16.mxu0 0
        %1275 = vmatpush1.bf16.msra.mxu0 %v1231
        %1276 = vmatprep.subr.bf16.mxu0 0
        %1277 = vmatpush1.bf16.msra.mxu0 %v1232
        %1278 = vmatprep.subr.bf16.mxu0 0
        %1279 = vmatpush1.bf16.msra.mxu0 %v1233
        %1280 = vmatprep.subr.bf16.mxu0 0
        %1281 = vmatpush1.bf16.msra.mxu0 %v1234
        %1282 = vmatprep.subr.bf16.mxu0 0
        %1283 = vmatpush1.bf16.msra.mxu0 %v1235
        %1284 = vmatprep.mubr.bf16.mxu0 %v1151
        %1285 = vmatmul.mubr.bf16.gmra.mrb[0].mxu0 %v1150
        %v1286 = vpop.f32.mrb[0].mxu0
        %v1287 = vadd.f32 %v1155, %v1286
        %v1288 = vpop.f32.mrb[0].mxu0
        %v1289 = vpop.f32.mrb[0].mxu0
        %v1290 = vpop.f32.mrb[0].mxu0
        %1291 = vdwg.mxu0
        %v1292 = vmax.f32 %v1287, 0.0
        %v1293 = vadd.f32 %v969, %v1292
        %1294 = vadd.xlane.f32.xlu0 %v1293
        %v1295 = vpop.xlane.xlu0 %1294
        %v1296 = vmul.f32 %v1295, %v950
        %v1297 = vsub.f32 %v1293, %v1296
        %v1298 = vmul.f32 %v1297, %v1297
        %1299 = vadd.xlane.f32.xlu0 %v1298
        %v1300 = vpop.xlane.xlu0 %1299
        %v1301 = vmul.f32 %v1300, %v950
        %v1302 = vadd.f32 %v1301, 1e-05
        %v1303 = vrsqrt.pop %v1302
        %v1304 = vmul.f32 %v1297, %v1303
        %v1305 = vlaneseq
        %v1306 = vshrl.u32 %v1305, 7
        %v1307 = vsub.s32 5, %v1306
        %v1308 = vrot.slane %v792, %v1307
        %v1309 = vmul.f32 %v1304, %v1308
        %v1310 = vlaneseq
        %v1311 = vshrl.u32 %v1310, 7
        %v1312 = vsub.s32 6, %v1311
        %v1313 = vrot.slane %v792, %v1312
        %v1314 = vadd.f32 %v1309, %v1313
        %1315 = vst [vmem:[#allocation10] sm:$0xff] %v1314
        // Predicated region
        $region69: #{tpu_custom_call.1} parent=47 // pred_check
          %p1316 = pneg %p228
        $region70: #{tpu_custom_call.1} parent=47 // pred_check_branch
          %1318 = sbr.rel (%p1316) target = $region72
        $region71: #{tpu_custom_call.1} parent=47 // pred_region
          %s1320 = ssub.s32 128, 128
          %1321 = vsyncadd [#allocation4], %s1320
          %s1322 = smul.addr %s30, 128
          %s1323 = scalar_lea.hbm %s7, %s1322
          %s1325 = sshll.u32 [#allocation10], 4
          %s1326 = int_to_ptr.vmem [resolvable:$true] %s1325
          %1328 = dma.vmem_to_hbm [thread:$0]  %s1326, 128, %s1323, [#allocation4]
        $region72: #{tpu_custom_call.1} parent=47 // pred_fallthru
          _
        // Predicated region
        $region73: #{tpu_custom_call.1} parent=47 // pred_check
          %p1329 = pneg %p228
        $region74: #{tpu_custom_call.1} parent=47 // pred_check_branch
          %1331 = sbr.rel (%p1329) target = $region76
        $region75: #{tpu_custom_call.1} parent=47 // pred_region
          %1332 = dma.done [#allocation4], 128
        $region76: #{tpu_custom_call.1} parent=47 // pred_fallthru
          _
      $region48: #{tpu_custom_call.1} parent=5 // pred_fallthru
        _
      %p1333 = scmp.le.s32.totalorder 2, %s21
      // Predicated region
      $region77: #{tpu_custom_call.1} parent=5 // pred_check
        %p1334 = pneg %p1333
      $region78: #{tpu_custom_call.1} parent=5 // pred_check_branch
        %1336 = sbr.rel (%p1334) target = $region80
      $region79: #{tpu_custom_call.1} parent=5 // pred_region
        %s1337 = ssub.s32 %s21, 2
      $region80: #{tpu_custom_call.1} parent=5 // pred_fallthru
        _
    $region6: #{tpu_custom_call.1} parent=1 // loop_footer
      %s25 = sadd.s32 1, %s21
    $region7: #{tpu_custom_call.1} parent=1 // loop_footer_branch
      %20 = sbr.rel target = $region3
    $region8: #{tpu_custom_call.1} parent=1 // loop_exit
      _
    %1338 = vsyncpa [#allocation3], 1
    %s1339 = scalar_lea.sflag [#allocation3], 1
    %1340 = vsyncpa %s1339, 1
    %1341 = vsyncpa [#allocation6], 1
    %s1342 = scalar_lea.sflag [#allocation6], 1
    %1343 = vsyncpa %s1342, 1
    %1344 = vsyncpa [#allocation9], 1
    %s1345 = scalar_lea.sflag [#allocation9], 1
    %1346 = vsyncpa %s1345, 1
    %1347 = vsyncpa [#allocation4], 1
    %s1348 = scalar_lea.sflag [#allocation4], 1
    %1349 = vsyncpa %s1348, 1

</llo_original>
